<compile_context>
chip_gen: v5e
topology: v5e:2x2
jax: 0.10.0
libtpu: 0.0.40
codegen_flags: <defaults>
</compile_context>

<pallas_src>
import functools
import math

import jax
import jax.numpy as jnp
from jax import lax
from jax.experimental import pallas as pl
from jax.experimental.pallas import tpu as pltpu


def _layernorm(x, g, b, eps):
    # Matches the torch module: (x - mean) / (std + eps) with UNBIASED std (N-1).
    mean = jnp.mean(x, axis=-1, keepdims=True)
    diff = x - mean
    var = jnp.sum(diff * diff, axis=-1, keepdims=True) * (1.0 / (x.shape[-1] - 1))
    std = jnp.sqrt(var)
    inv = pl.reciprocal(std + eps, approx=True)
    return g * diff * inv + b


def encoder_block_kernel(*refs, n_heads, dim_head, residual1, add_pe, eps):
    f32 = jnp.float32
    bf16 = jnp.bfloat16

    idx = 0
    x_ref = refs[idx]; idx += 1
    if add_pe:
        pe_ref = refs[idx]; idx += 1
    else:
        pe_ref = None
    mask_ref = refs[idx]; idx += 1
    (wq_ref, bq_ref, wk_ref, bk_ref, wv_ref, bv_ref, wo_ref, bo_ref,
     w1_ref, b1_ref, w2_ref, b2_ref,
     g1_ref, be1_ref, g2_ref, be2_ref) = refs[idx:idx + 16]
    out_ref = refs[idx + 16]
    attn_ref = refs[idx + 17]          # VMEM scratch (S, D_out) f32

    x = x_ref[...].astype(f32)                       # (S, D_in)
    if add_pe:
        x = x + pe_ref[...].astype(f32)

    x_bf = x.astype(bf16)

    # ---- QKV projections: dense MXU matmuls, bf16 in / f32 accumulate ----
    q = jnp.dot(x_bf, wq_ref[...], preferred_element_type=f32) + bq_ref[...]
    k = jnp.dot(x_bf, wk_ref[...], preferred_element_type=f32) + bk_ref[...]
    v = jnp.dot(x_bf, wv_ref[...], preferred_element_type=f32) + bv_ref[...]
    q_bf = q.astype(bf16)
    k_bf = k.astype(bf16)
    v_bf = v.astype(bf16)

    # additive mask bias, computed once (hoisted out of the head loop)
    mask_row = mask_ref[...].astype(f32)             # (1, S)
    bias = jnp.where(mask_row == 0.0, jnp.float32(-jnp.inf), jnp.float32(0.0))

    scale = jnp.float32(1.0 / math.sqrt(dim_head))
    # contract the head dims of Q and K directly (Q @ K^T, no explicit transpose)
    dims_qkt = (((1,), (1,)), ((), ()))

    for h in range(n_heads):                         # static unroll over heads
        sl = slice(h * dim_head, (h + 1) * dim_head)
        qs = q_bf[:, sl]
        ks = k_bf[:, sl]
        vs = v_bf[:, sl]
        score = lax.dot_general(qs, ks, dims_qkt,
                                preferred_element_type=f32) * scale + bias
        m = jnp.max(score, axis=-1, keepdims=True)
        e = jnp.exp(score - m)
        w = e * pl.reciprocal(jnp.sum(e, axis=-1, keepdims=True), approx=True)
        # write this head's output into the scratch slab (no concatenate)
        attn_ref[:, sl] = jnp.dot(w.astype(bf16), vs, preferred_element_type=f32)

    attn_out = (jnp.dot(attn_ref[...].astype(bf16), wo_ref[...],
                        preferred_element_type=f32) + bo_ref[...])

    # dropout = identity (eval mode)
    h1 = x + attn_out if residual1 else attn_out
    y = _layernorm(h1, g1_ref[...], be1_ref[...], eps)

    # ---- position-wise feed-forward ----
    ff = jnp.dot(y.astype(bf16), w1_ref[...], preferred_element_type=f32) + b1_ref[...]
    ff = jnp.maximum(ff, 0.0)
    ff = jnp.dot(ff.astype(bf16), w2_ref[...], preferred_element_type=f32) + b2_ref[...]
    z = _layernorm(y + ff, g2_ref[...], be2_ref[...], eps)

    out_ref[...] = z.astype(out_ref.dtype)


def run_encoder_block(x, mask3, blk, *, n_heads, residual1, pe=None, eps=1e-6):
    B, S, D_in = x.shape
    D_out = blk["wo"].shape[1]
    dim_head = D_out // n_heads
    add_pe = pe is not None

    bf16 = jnp.bfloat16
    f32 = jnp.float32
    # matmul weights travel as bf16 (MXU-native); biases / LN params stay f32
    weights = [
        blk["wq"].astype(bf16), blk["bq"].astype(f32),
        blk["wk"].astype(bf16), blk["bk"].astype(f32),
        blk["wv"].astype(bf16), blk["bv"].astype(f32),
        blk["wo"].astype(bf16), blk["bo"].astype(f32),
        blk["w1"].astype(bf16), blk["b1"].astype(f32),
        blk["w2"].astype(bf16), blk["b2"].astype(f32),
        blk["g1"].astype(f32), blk["be1"].astype(f32),
        blk["g2"].astype(f32), blk["be2"].astype(f32),
    ]

    kernel = functools.partial(encoder_block_kernel,
                               n_heads=n_heads, dim_head=dim_head,
                               residual1=residual1, add_pe=add_pe, eps=eps)

    in_specs = [pl.BlockSpec((None, S, D_in), lambda b: (b, 0, 0))]   # x (batch squeezed)
    inputs = [x]
    if add_pe:   # PE only wired in for the first block (no zero-slab DMA later)
        in_specs.append(pl.BlockSpec((S, D_in), lambda b: (0, 0)))
        inputs.append(pe)
    in_specs.append(pl.BlockSpec((None, 1, S), lambda b: (b, 0, 0)))  # mask (batch squeezed)
    inputs.append(mask3)
    in_specs += [pl.BlockSpec(w.shape, lambda b, nd=w.ndim: (0,) * nd) for w in weights]
    inputs += weights

    return pl.pallas_call(
        kernel,
        out_shape=jax.ShapeDtypeStruct((B, S, D_out), x.dtype),
        grid=(B,),
        in_specs=in_specs,
        out_specs=pl.BlockSpec((None, S, D_out), lambda b: (b, 0, 0)),
        scratch_shapes=[pltpu.VMEM((S, D_out), jnp.float32)],
        compiler_params=pltpu.CompilerParams(
            dimension_semantics=("parallel",),
            vmem_limit_bytes=64 * 1024 * 1024,
        ),
    )(*inputs)


def make_positional_encoding(max_len, d_model):
    position = jnp.arange(max_len, dtype=jnp.float32)[:, None]
    div_term = jnp.exp(jnp.arange(0, d_model, 2, dtype=jnp.float32)
                       * -(math.log(10000.0) / d_model))
    pe = jnp.zeros((max_len, d_model), jnp.float32)
    pe = pe.at[:, 0::2].set(jnp.sin(position * div_term))
    pe = pe.at[:, 1::2].set(jnp.cos(position * div_term))
    return pe


def init_params(key, dim_input, dim_output, n_heads, dim_ff, n_blocks, max_pos):
    params = {"pe": make_positional_encoding(max_pos, dim_input), "blocks": []}
    d_in = dim_input
    for _ in range(n_blocks):
        blk = {}

        def lin(key, fan_in, fan_out):
            kw, kb = jax.random.split(key)
            w = jax.random.normal(kw, (fan_in, fan_out), jnp.float32) / math.sqrt(fan_in)
            b = jax.random.normal(kb, (1, fan_out), jnp.float32) * 0.02
            return w, b

        key, *ks = jax.random.split(key, 7)
        blk["wq"], blk["bq"] = lin(ks[0], d_in, dim_output)
        blk["wk"], blk["bk"] = lin(ks[1], d_in, dim_output)
        blk["wv"], blk["bv"] = lin(ks[2], d_in, dim_output)
        blk["wo"], blk["bo"] = lin(ks[3], dim_output, dim_output)
        blk["w1"], blk["b1"] = lin(ks[4], dim_output, dim_ff)
        blk["w2"], blk["b2"] = lin(ks[5], dim_ff, dim_output)
        blk["g1"] = jnp.ones((1, dim_output), jnp.float32)
        blk["be1"] = jnp.zeros((1, dim_output), jnp.float32)
        blk["g2"] = jnp.ones((1, dim_output), jnp.float32)
        blk["be2"] = jnp.zeros((1, dim_output), jnp.float32)
        params["blocks"].append(blk)
        d_in = dim_output
    return params


def encoder_forward(x, lens, params, *, n_heads):
    B, S, D_in = x.shape
    pe = params["pe"][:S].astype(x.dtype)                          # (S, D_in)
    mask3 = (jnp.arange(S)[None, :] < lens[:, None]).astype(x.dtype)[:, None, :]  # (B,1,S)
    h = x
    d_cur = D_in
    for i, blk in enumerate(params["blocks"]):
        d_out = blk["wo"].shape[1]
        h = run_encoder_block(h, mask3, blk, n_heads=n_heads,
                              residual1=(d_cur == d_out),
                              pe=pe if i == 0 else None)
        d_cur = d_out
    return h


# ---------------- pure-JAX reference (sanity check) ----------------
def encoder_ref(x, lens, params, *, n_heads, eps=1e-6):
    hp = jax.lax.Precision.HIGHEST
    B, S, D_in = x.shape
    mask = (jnp.arange(S)[None, :] < lens[:, None]).astype(x.dtype)
    h = x + params["pe"][:S][None]
    for i, blk in enumerate(params["blocks"]):
        d_out = blk["wo"].shape[1]
        dh = d_out // n_heads
        q = jnp.einsum("bsd,de->bse", h, blk["wq"], precision=hp) + blk["bq"]
        k = jnp.einsum("bsd,de->bse", h, blk["wk"], precision=hp) + blk["bk"]
        v = jnp.einsum("bsd,de->bse", h, blk["wv"], precision=hp) + blk["bv"]
        q = q.reshape(B, S, n_heads, dh).transpose(0, 2, 1, 3)
        k = k.reshape(B, S, n_heads, dh).transpose(0, 2, 1, 3)
        v = v.reshape(B, S, n_heads, dh).transpose(0, 2, 1, 3)
        sc = jnp.einsum("bhqd,bhkd->bhqk", q, k, precision=hp) / math.sqrt(dh)
        sc = jnp.where(mask[:, None, None, :] == 0, -jnp.inf, sc)
        w = jax.nn.softmax(sc, axis=-1)
        att = jnp.einsum("bhqk,bhkd->bhqd", w, v, precision=hp)
        att = att.transpose(0, 2, 1, 3).reshape(B, S, d_out)
        att = jnp.einsum("bsd,de->bse", att, blk["wo"], precision=hp) + blk["bo"]

        def ln(t, g, b):
            m = t.mean(-1, keepdims=True)
            d = t - m
            std = jnp.sqrt((d * d).sum(-1, keepdims=True) / (t.shape[-1] - 1))
            return g * d / (std + eps) + b

        y = ln(h + att if h.shape[-1] == d_out else att, blk["g1"], blk["be1"])
        ff = jnp.maximum(jnp.einsum("bsd,df->bsf", y, blk["w1"], precision=hp) + blk["b1"], 0.0)
        ff = jnp.einsum("bsf,fd->bsd", ff, blk["w2"], precision=hp) + blk["b2"]
        h = ln(y + ff, blk["g2"], blk["be2"])
    return h


if __name__ == "__main__":
    # Small shapes: first block changes dims (64 -> 128, no residual1),
    # second block is 128 -> 128 (residual1 active). dh = 32, 4 heads.
    B, S, D_IN, D_OUT, H, D_FF, N_BLOCKS = 2, 16, 64, 128, 4, 256, 2

    key = jax.random.PRNGKey(0)
    kx, kp = jax.random.split(key)
    x = jax.random.normal(kx, (B, S, D_IN), jnp.float32)
    lens = jnp.array([16, 11], jnp.int32)

    params = init_params(kp, D_IN, D_OUT, H, D_FF, N_BLOCKS, max_pos=1000)

    out = jax.block_until_ready(encoder_forward(x, lens, params, n_heads=H))
    ref = encoder_ref(x, lens, params, n_heads=H)

    assert out.shape == (B, S, D_OUT)
    max_err = float(jnp.max(jnp.abs(out - ref)))
    # bf16 MXU inputs + approx reciprocals vs f32 HIGHEST reference
    assert jnp.allclose(out, ref, atol=1.5e-1, rtol=1e-1), max_err

    print("KERNEL_OK")
</pallas_src>

<mosaic_0001>
module attributes {stable_mosaic.version = 11 : i64} {
  func.func @encoder_block_kernel(%arg0: i32, %arg1: memref<1x16x64xf32, #tpu.memory_space<vmem>>, %arg2: memref<16x64xf32, #tpu.memory_space<vmem>>, %arg3: memref<1x1x16xf32, #tpu.memory_space<vmem>>, %arg4: memref<64x128xbf16, #tpu.memory_space<vmem>>, %arg5: memref<1x128xf32, #tpu.memory_space<vmem>>, %arg6: memref<64x128xbf16, #tpu.memory_space<vmem>>, %arg7: memref<1x128xf32, #tpu.memory_space<vmem>>, %arg8: memref<64x128xbf16, #tpu.memory_space<vmem>>, %arg9: memref<1x128xf32, #tpu.memory_space<vmem>>, %arg10: memref<128x128xbf16, #tpu.memory_space<vmem>>, %arg11: memref<1x128xf32, #tpu.memory_space<vmem>>, %arg12: memref<128x256xbf16, #tpu.memory_space<vmem>>, %arg13: memref<1x256xf32, #tpu.memory_space<vmem>>, %arg14: memref<256x128xbf16, #tpu.memory_space<vmem>>, %arg15: memref<1x128xf32, #tpu.memory_space<vmem>>, %arg16: memref<1x128xf32, #tpu.memory_space<vmem>>, %arg17: memref<1x128xf32, #tpu.memory_space<vmem>>, %arg18: memref<1x128xf32, #tpu.memory_space<vmem>>, %arg19: memref<1x128xf32, #tpu.memory_space<vmem>>, %arg20: memref<1x16x128xf32, #tpu.memory_space<vmem>>, %arg21: memref<16x128xf32, #tpu.memory_space<vmem>>) attributes {dimension_semantics = [#tpu.dimension_semantics<parallel>], iteration_bounds = array<i64: 2>, scalar_prefetch = 0 : i64, scratch_operands = 1 : i64, tpu.core_type = #tpu.core_type<tc>, window_params = [{transform_indices = @transform_0, window_bounds = array<i64: 1, 16, 64>}, {pipeline_mode = #tpu.pipeline_mode<synchronous>, transform_indices = @transform_1, window_bounds = array<i64: 16, 64>}, {transform_indices = @transform_2, window_bounds = array<i64: 1, 1, 16>}, {pipeline_mode = #tpu.pipeline_mode<synchronous>, transform_indices = @transform_3, window_bounds = array<i64: 64, 128>}, {pipeline_mode = #tpu.pipeline_mode<synchronous>, transform_indices = @transform_4, window_bounds = array<i64: 1, 128>}, {pipeline_mode = #tpu.pipeline_mode<synchronous>, transform_indices = @transform_5, window_bounds = array<i64: 64, 128>}, {pipeline_mode = #tpu.pipeline_mode<synchronous>, transform_indices = @transform_6, window_bounds = array<i64: 1, 128>}, {pipeline_mode = #tpu.pipeline_mode<synchronous>, transform_indices = @transform_7, window_bounds = array<i64: 64, 128>}, {pipeline_mode = #tpu.pipeline_mode<synchronous>, transform_indices = @transform_8, window_bounds = array<i64: 1, 128>}, {pipeline_mode = #tpu.pipeline_mode<synchronous>, transform_indices = @transform_9, window_bounds = array<i64: 128, 128>}, {pipeline_mode = #tpu.pipeline_mode<synchronous>, transform_indices = @transform_10, window_bounds = array<i64: 1, 128>}, {pipeline_mode = #tpu.pipeline_mode<synchronous>, transform_indices = @transform_11, window_bounds = array<i64: 128, 256>}, {pipeline_mode = #tpu.pipeline_mode<synchronous>, transform_indices = @transform_12, window_bounds = array<i64: 1, 256>}, {pipeline_mode = #tpu.pipeline_mode<synchronous>, transform_indices = @transform_13, window_bounds = array<i64: 256, 128>}, {pipeline_mode = #tpu.pipeline_mode<synchronous>, transform_indices = @transform_14, window_bounds = array<i64: 1, 128>}, {pipeline_mode = #tpu.pipeline_mode<synchronous>, transform_indices = @transform_15, window_bounds = array<i64: 1, 128>}, {pipeline_mode = #tpu.pipeline_mode<synchronous>, transform_indices = @transform_16, window_bounds = array<i64: 1, 128>}, {pipeline_mode = #tpu.pipeline_mode<synchronous>, transform_indices = @transform_17, window_bounds = array<i64: 1, 128>}, {pipeline_mode = #tpu.pipeline_mode<synchronous>, transform_indices = @transform_18, window_bounds = array<i64: 1, 128>}, {transform_indices = @transform_19, window_bounds = array<i64: 1, 16, 128>}]} {
    %c0 = arith.constant 0 : index
    %c0_0 = arith.constant 0 : index
    %c0_1 = arith.constant 0 : index
    %0 = vector.load %arg1[%c0, %c0_0, %c0_1] : memref<1x16x64xf32, #tpu.memory_space<vmem>>, vector<1x16x64xf32>
    %1 = vector.shape_cast %0 : vector<1x16x64xf32> to vector<16x64xf32>
    %c0_2 = arith.constant 0 : index
    %c0_3 = arith.constant 0 : index
    %2 = vector.load %arg2[%c0_2, %c0_3] : memref<16x64xf32, #tpu.memory_space<vmem>>, vector<16x64xf32>
    %3 = arith.addf %1, %2 : vector<16x64xf32>
    %4 = arith.truncf %3 : vector<16x64xf32> to vector<16x64xbf16>
    %c0_4 = arith.constant 0 : index
    %c0_5 = arith.constant 0 : index
    %5 = vector.load %arg4[%c0_4, %c0_5] : memref<64x128xbf16, #tpu.memory_space<vmem>>, vector<64x128xbf16>
    %cst = arith.constant dense<0.000000e+00> : vector<16x128xf32>
    %6 = tpu.matmul %4, %5, %cst {dimension_numbers = #tpu.dot_dimension_numbers<[1], [0], [0], [1], [0, 0, 1, 1], [], []>} : vector<16x64xbf16>, vector<64x128xbf16>, vector<16x128xf32> -> vector<16x128xf32>
    %c0_6 = arith.constant 0 : index
    %c0_7 = arith.constant 0 : index
    %7 = vector.load %arg5[%c0_6, %c0_7] : memref<1x128xf32, #tpu.memory_space<vmem>>, vector<1x128xf32>
    %8 = vector.broadcast %7 : vector<1x128xf32> to vector<16x128xf32>
    %9 = arith.addf %6, %8 : vector<16x128xf32>
    %c0_8 = arith.constant 0 : index
    %c0_9 = arith.constant 0 : index
    %10 = vector.load %arg6[%c0_8, %c0_9] : memref<64x128xbf16, #tpu.memory_space<vmem>>, vector<64x128xbf16>
    %cst_10 = arith.constant dense<0.000000e+00> : vector<16x128xf32>
    %11 = tpu.matmul %4, %10, %cst_10 {dimension_numbers = #tpu.dot_dimension_numbers<[1], [0], [0], [1], [0, 0, 1, 1], [], []>} : vector<16x64xbf16>, vector<64x128xbf16>, vector<16x128xf32> -> vector<16x128xf32>
    %c0_11 = arith.constant 0 : index
    %c0_12 = arith.constant 0 : index
    %12 = vector.load %arg7[%c0_11, %c0_12] : memref<1x128xf32, #tpu.memory_space<vmem>>, vector<1x128xf32>
    %13 = vector.broadcast %12 : vector<1x128xf32> to vector<16x128xf32>
    %14 = arith.addf %11, %13 : vector<16x128xf32>
    %c0_13 = arith.constant 0 : index
    %c0_14 = arith.constant 0 : index
    %15 = vector.load %arg8[%c0_13, %c0_14] : memref<64x128xbf16, #tpu.memory_space<vmem>>, vector<64x128xbf16>
    %cst_15 = arith.constant dense<0.000000e+00> : vector<16x128xf32>
    %16 = tpu.matmul %4, %15, %cst_15 {dimension_numbers = #tpu.dot_dimension_numbers<[1], [0], [0], [1], [0, 0, 1, 1], [], []>} : vector<16x64xbf16>, vector<64x128xbf16>, vector<16x128xf32> -> vector<16x128xf32>
    %c0_16 = arith.constant 0 : index
    %c0_17 = arith.constant 0 : index
    %17 = vector.load %arg9[%c0_16, %c0_17] : memref<1x128xf32, #tpu.memory_space<vmem>>, vector<1x128xf32>
    %18 = vector.broadcast %17 : vector<1x128xf32> to vector<16x128xf32>
    %19 = arith.addf %16, %18 : vector<16x128xf32>
    %20 = arith.truncf %9 : vector<16x128xf32> to vector<16x128xbf16>
    %21 = arith.truncf %14 : vector<16x128xf32> to vector<16x128xbf16>
    %22 = arith.truncf %19 : vector<16x128xf32> to vector<16x128xbf16>
    %c0_18 = arith.constant 0 : index
    %c0_19 = arith.constant 0 : index
    %c0_20 = arith.constant 0 : index
    %23 = vector.load %arg3[%c0_18, %c0_19, %c0_20] : memref<1x1x16xf32, #tpu.memory_space<vmem>>, vector<1x1x16xf32>
    %24 = vector.shape_cast %23 : vector<1x1x16xf32> to vector<1x16xf32>
    %cst_21 = arith.constant 0.000000e+00 : f32
    %25 = vector.broadcast %cst_21 : f32 to vector<1x16xf32>
    %26 = arith.cmpf oeq, %24, %25 : vector<1x16xf32>
    %cst_22 = arith.constant 0xFF800000 : f32
    %cst_23 = arith.constant 0.000000e+00 : f32
    %27 = vector.broadcast %cst_22 : f32 to vector<1x16xf32>
    %28 = vector.broadcast %cst_23 : f32 to vector<1x16xf32>
    %29 = arith.select %26, %27, %28 : vector<1x16xi1>, vector<1x16xf32>
    %30 = vector.extract_strided_slice %20 {offsets = [0, 0], sizes = [16, 32], strides = [1, 1]} : vector<16x128xbf16> to vector<16x32xbf16>
    %31 = vector.extract_strided_slice %21 {offsets = [0, 0], sizes = [16, 32], strides = [1, 1]} : vector<16x128xbf16> to vector<16x32xbf16>
    %32 = vector.extract_strided_slice %22 {offsets = [0, 0], sizes = [16, 32], strides = [1, 1]} : vector<16x128xbf16> to vector<16x32xbf16>
    %cst_24 = arith.constant dense<0.000000e+00> : vector<16x16xf32>
    %33 = tpu.matmul %30, %31, %cst_24 {dimension_numbers = #tpu.dot_dimension_numbers<[1], [1], [0], [0], [0, 0, 1, 0], [], []>} : vector<16x32xbf16>, vector<16x32xbf16>, vector<16x16xf32> -> vector<16x16xf32>
    %cst_25 = arith.constant 0.176776692 : f32
    %34 = vector.broadcast %cst_25 : f32 to vector<16x16xf32>
    %35 = arith.mulf %33, %34 : vector<16x16xf32>
    %36 = vector.broadcast %29 : vector<1x16xf32> to vector<16x16xf32>
    %37 = arith.addf %35, %36 : vector<16x16xf32>
    %cst_26 = arith.constant dense<0xFF800000> : vector<16xf32>
    %38 = vector.multi_reduction <maximumf>, %37, %cst_26 [1] : vector<16x16xf32> to vector<16xf32>
    %39 = vector.shape_cast %38 : vector<16xf32> to vector<16x1xf32>
    %40 = vector.broadcast %39 : vector<16x1xf32> to vector<16x16xf32>
    %41 = arith.subf %37, %40 : vector<16x16xf32>
    %42 = math.exp %41 : vector<16x16xf32>
    %cst_27 = arith.constant dense<0.000000e+00> : vector<16xf32>
    %43 = vector.multi_reduction <add>, %42, %cst_27 [1] : vector<16x16xf32> to vector<16xf32>
    %44 = vector.shape_cast %43 : vector<16xf32> to vector<16x1xf32>
    %45 = tpu.reciprocal %44 {approx = true} : vector<16x1xf32> -> vector<16x1xf32>
    %46 = vector.broadcast %45 : vector<16x1xf32> to vector<16x16xf32>
    %47 = arith.mulf %42, %46 : vector<16x16xf32>
    %48 = arith.truncf %47 : vector<16x16xf32> to vector<16x16xbf16>
    %cst_28 = arith.constant dense<0.000000e+00> : vector<16x32xf32>
    %49 = tpu.matmul %48, %32, %cst_28 {dimension_numbers = #tpu.dot_dimension_numbers<[1], [0], [0], [1], [0, 0, 1, 1], [], []>} : vector<16x16xbf16>, vector<16x32xbf16>, vector<16x32xf32> -> vector<16x32xf32>
    %c0_29 = arith.constant 0 : index
    %c0_30 = arith.constant 0 : index
    %50 = vector.load %arg21[%c0_29, %c0_30] : memref<16x128xf32, #tpu.memory_space<vmem>>, vector<16x32xf32>
    tpu.vector_store %arg21[%c0_29, %c0_30], %49 {strides = array<i32>} : memref<16x128xf32, #tpu.memory_space<vmem>>, vector<16x32xf32>,
    %51 = vector.extract_strided_slice %20 {offsets = [0, 32], sizes = [16, 32], strides = [1, 1]} : vector<16x128xbf16> to vector<16x32xbf16>
    %52 = vector.extract_strided_slice %21 {offsets = [0, 32], sizes = [16, 32], strides = [1, 1]} : vector<16x128xbf16> to vector<16x32xbf16>
    %53 = vector.extract_strided_slice %22 {offsets = [0, 32], sizes = [16, 32], strides = [1, 1]} : vector<16x128xbf16> to vector<16x32xbf16>
    %cst_31 = arith.constant dense<0.000000e+00> : vector<16x16xf32>
    %54 = tpu.matmul %51, %52, %cst_31 {dimension_numbers = #tpu.dot_dimension_numbers<[1], [1], [0], [0], [0, 0, 1, 0], [], []>} : vector<16x32xbf16>, vector<16x32xbf16>, vector<16x16xf32> -> vector<16x16xf32>
    %cst_32 = arith.constant 0.176776692 : f32
    %55 = vector.broadcast %cst_32 : f32 to vector<16x16xf32>
    %56 = arith.mulf %54, %55 : vector<16x16xf32>
    %57 = vector.broadcast %29 : vector<1x16xf32> to vector<16x16xf32>
    %58 = arith.addf %56, %57 : vector<16x16xf32>
    %cst_33 = arith.constant dense<0xFF800000> : vector<16xf32>
    %59 = vector.multi_reduction <maximumf>, %58, %cst_33 [1] : vector<16x16xf32> to vector<16xf32>
    %60 = vector.shape_cast %59 : vector<16xf32> to vector<16x1xf32>
    %61 = vector.broadcast %60 : vector<16x1xf32> to vector<16x16xf32>
    %62 = arith.subf %58, %61 : vector<16x16xf32>
    %63 = math.exp %62 : vector<16x16xf32>
    %cst_34 = arith.constant dense<0.000000e+00> : vector<16xf32>
    %64 = vector.multi_reduction <add>, %63, %cst_34 [1] : vector<16x16xf32> to vector<16xf32>
    %65 = vector.shape_cast %64 : vector<16xf32> to vector<16x1xf32>
    %66 = tpu.reciprocal %65 {approx = true} : vector<16x1xf32> -> vector<16x1xf32>
    %67 = vector.broadcast %66 : vector<16x1xf32> to vector<16x16xf32>
    %68 = arith.mulf %63, %67 : vector<16x16xf32>
    %69 = arith.truncf %68 : vector<16x16xf32> to vector<16x16xbf16>
    %cst_35 = arith.constant dense<0.000000e+00> : vector<16x32xf32>
    %70 = tpu.matmul %69, %53, %cst_35 {dimension_numbers = #tpu.dot_dimension_numbers<[1], [0], [0], [1], [0, 0, 1, 1], [], []>} : vector<16x16xbf16>, vector<16x32xbf16>, vector<16x32xf32> -> vector<16x32xf32>
    %c0_36 = arith.constant 0 : index
    %c32 = arith.constant 32 : index
    %71 = vector.load %arg21[%c0_36, %c32] : memref<16x128xf32, #tpu.memory_space<vmem>>, vector<16x32xf32>
    tpu.vector_store %arg21[%c0_36, %c32], %70 {strides = array<i32>} : memref<16x128xf32, #tpu.memory_space<vmem>>, vector<16x32xf32>,
    %72 = vector.extract_strided_slice %20 {offsets = [0, 64], sizes = [16, 32], strides = [1, 1]} : vector<16x128xbf16> to vector<16x32xbf16>
    %73 = vector.extract_strided_slice %21 {offsets = [0, 64], sizes = [16, 32], strides = [1, 1]} : vector<16x128xbf16> to vector<16x32xbf16>
    %74 = vector.extract_strided_slice %22 {offsets = [0, 64], sizes = [16, 32], strides = [1, 1]} : vector<16x128xbf16> to vector<16x32xbf16>
    %cst_37 = arith.constant dense<0.000000e+00> : vector<16x16xf32>
    %75 = tpu.matmul %72, %73, %cst_37 {dimension_numbers = #tpu.dot_dimension_numbers<[1], [1], [0], [0], [0, 0, 1, 0], [], []>} : vector<16x32xbf16>, vector<16x32xbf16>, vector<16x16xf32> -> vector<16x16xf32>
    %cst_38 = arith.constant 0.176776692 : f32
    %76 = vector.broadcast %cst_38 : f32 to vector<16x16xf32>
    %77 = arith.mulf %75, %76 : vector<16x16xf32>
    %78 = vector.broadcast %29 : vector<1x16xf32> to vector<16x16xf32>
    %79 = arith.addf %77, %78 : vector<16x16xf32>
    %cst_39 = arith.constant dense<0xFF800000> : vector<16xf32>
    %80 = vector.multi_reduction <maximumf>, %79, %cst_39 [1] : vector<16x16xf32> to vector<16xf32>
    %81 = vector.shape_cast %80 : vector<16xf32> to vector<16x1xf32>
    %82 = vector.broadcast %81 : vector<16x1xf32> to vector<16x16xf32>
    %83 = arith.subf %79, %82 : vector<16x16xf32>
    %84 = math.exp %83 : vector<16x16xf32>
    %cst_40 = arith.constant dense<0.000000e+00> : vector<16xf32>
    %85 = vector.multi_reduction <add>, %84, %cst_40 [1] : vector<16x16xf32> to vector<16xf32>
    %86 = vector.shape_cast %85 : vector<16xf32> to vector<16x1xf32>
    %87 = tpu.reciprocal %86 {approx = true} : vector<16x1xf32> -> vector<16x1xf32>
    %88 = vector.broadcast %87 : vector<16x1xf32> to vector<16x16xf32>
    %89 = arith.mulf %84, %88 : vector<16x16xf32>
    %90 = arith.truncf %89 : vector<16x16xf32> to vector<16x16xbf16>
    %cst_41 = arith.constant dense<0.000000e+00> : vector<16x32xf32>
    %91 = tpu.matmul %90, %74, %cst_41 {dimension_numbers = #tpu.dot_dimension_numbers<[1], [0], [0], [1], [0, 0, 1, 1], [], []>} : vector<16x16xbf16>, vector<16x32xbf16>, vector<16x32xf32> -> vector<16x32xf32>
    %c0_42 = arith.constant 0 : index
    %c64 = arith.constant 64 : index
    %92 = vector.load %arg21[%c0_42, %c64] : memref<16x128xf32, #tpu.memory_space<vmem>>, vector<16x32xf32>
    tpu.vector_store %arg21[%c0_42, %c64], %91 {strides = array<i32>} : memref<16x128xf32, #tpu.memory_space<vmem>>, vector<16x32xf32>,
    %93 = vector.extract_strided_slice %20 {offsets = [0, 96], sizes = [16, 32], strides = [1, 1]} : vector<16x128xbf16> to vector<16x32xbf16>
    %94 = vector.extract_strided_slice %21 {offsets = [0, 96], sizes = [16, 32], strides = [1, 1]} : vector<16x128xbf16> to vector<16x32xbf16>
    %95 = vector.extract_strided_slice %22 {offsets = [0, 96], sizes = [16, 32], strides = [1, 1]} : vector<16x128xbf16> to vector<16x32xbf16>
    %cst_43 = arith.constant dense<0.000000e+00> : vector<16x16xf32>
    %96 = tpu.matmul %93, %94, %cst_43 {dimension_numbers = #tpu.dot_dimension_numbers<[1], [1], [0], [0], [0, 0, 1, 0], [], []>} : vector<16x32xbf16>, vector<16x32xbf16>, vector<16x16xf32> -> vector<16x16xf32>
    %cst_44 = arith.constant 0.176776692 : f32
    %97 = vector.broadcast %cst_44 : f32 to vector<16x16xf32>
    %98 = arith.mulf %96, %97 : vector<16x16xf32>
    %99 = vector.broadcast %29 : vector<1x16xf32> to vector<16x16xf32>
    %100 = arith.addf %98, %99 : vector<16x16xf32>
    %cst_45 = arith.constant dense<0xFF800000> : vector<16xf32>
    %101 = vector.multi_reduction <maximumf>, %100, %cst_45 [1] : vector<16x16xf32> to vector<16xf32>
    %102 = vector.shape_cast %101 : vector<16xf32> to vector<16x1xf32>
    %103 = vector.broadcast %102 : vector<16x1xf32> to vector<16x16xf32>
    %104 = arith.subf %100, %103 : vector<16x16xf32>
    %105 = math.exp %104 : vector<16x16xf32>
    %cst_46 = arith.constant dense<0.000000e+00> : vector<16xf32>
    %106 = vector.multi_reduction <add>, %105, %cst_46 [1] : vector<16x16xf32> to vector<16xf32>
    %107 = vector.shape_cast %106 : vector<16xf32> to vector<16x1xf32>
    %108 = tpu.reciprocal %107 {approx = true} : vector<16x1xf32> -> vector<16x1xf32>
    %109 = vector.broadcast %108 : vector<16x1xf32> to vector<16x16xf32>
    %110 = arith.mulf %105, %109 : vector<16x16xf32>
    %111 = arith.truncf %110 : vector<16x16xf32> to vector<16x16xbf16>
    %cst_47 = arith.constant dense<0.000000e+00> : vector<16x32xf32>
    %112 = tpu.matmul %111, %95, %cst_47 {dimension_numbers = #tpu.dot_dimension_numbers<[1], [0], [0], [1], [0, 0, 1, 1], [], []>} : vector<16x16xbf16>, vector<16x32xbf16>, vector<16x32xf32> -> vector<16x32xf32>
    %c0_48 = arith.constant 0 : index
    %c96 = arith.constant 96 : index
    %113 = vector.load %arg21[%c0_48, %c96] : memref<16x128xf32, #tpu.memory_space<vmem>>, vector<16x32xf32>
    tpu.vector_store %arg21[%c0_48, %c96], %112 {strides = array<i32>} : memref<16x128xf32, #tpu.memory_space<vmem>>, vector<16x32xf32>,
    %c0_49 = arith.constant 0 : index
    %c0_50 = arith.constant 0 : index
    %114 = vector.load %arg21[%c0_49, %c0_50] : memref<16x128xf32, #tpu.memory_space<vmem>>, vector<16x128xf32>
    %115 = arith.truncf %114 : vector<16x128xf32> to vector<16x128xbf16>
    %c0_51 = arith.constant 0 : index
    %c0_52 = arith.constant 0 : index
    %116 = vector.load %arg10[%c0_51, %c0_52] : memref<128x128xbf16, #tpu.memory_space<vmem>>, vector<128x128xbf16>
    %cst_53 = arith.constant dense<0.000000e+00> : vector<16x128xf32>
    %117 = tpu.matmul %115, %116, %cst_53 {dimension_numbers = #tpu.dot_dimension_numbers<[1], [0], [0], [1], [0, 0, 1, 1], [], []>} : vector<16x128xbf16>, vector<128x128xbf16>, vector<16x128xf32> -> vector<16x128xf32>
    %c0_54 = arith.constant 0 : index
    %c0_55 = arith.constant 0 : index
    %118 = vector.load %arg11[%c0_54, %c0_55] : memref<1x128xf32, #tpu.memory_space<vmem>>, vector<1x128xf32>
    %119 = vector.broadcast %118 : vector<1x128xf32> to vector<16x128xf32>
    %120 = arith.addf %117, %119 : vector<16x128xf32>
    %c0_56 = arith.constant 0 : index
    %c0_57 = arith.constant 0 : index
    %121 = vector.load %arg16[%c0_56, %c0_57] : memref<1x128xf32, #tpu.memory_space<vmem>>, vector<1x128xf32>
    %c0_58 = arith.constant 0 : index
    %c0_59 = arith.constant 0 : index
    %122 = vector.load %arg17[%c0_58, %c0_59] : memref<1x128xf32, #tpu.memory_space<vmem>>, vector<1x128xf32>
    %cst_60 = arith.constant dense<0.000000e+00> : vector<16xf32>
    %123 = vector.multi_reduction <add>, %120, %cst_60 [1] : vector<16x128xf32> to vector<16xf32>
    %124 = vector.shape_cast %123 : vector<16xf32> to vector<16x1xf32>
    %cst_61 = arith.constant 1.280000e+02 : f32
    %125 = vector.broadcast %cst_61 : f32 to vector<16x1xf32>
    %126 = arith.divf %124, %125 : vector<16x1xf32>
    %127 = vector.broadcast %126 : vector<16x1xf32> to vector<16x128xf32>
    %128 = arith.subf %120, %127 : vector<16x128xf32>
    %129 = arith.mulf %128, %128 : vector<16x128xf32>
    %cst_62 = arith.constant dense<0.000000e+00> : vector<16xf32>
    %130 = vector.multi_reduction <add>, %129, %cst_62 [1] : vector<16x128xf32> to vector<16xf32>
    %131 = vector.shape_cast %130 : vector<16xf32> to vector<16x1xf32>
    %cst_63 = arith.constant 0.00787401571 : f32
    %132 = vector.broadcast %cst_63 : f32 to vector<16x1xf32>
    %133 = arith.mulf %131, %132 : vector<16x1xf32>
    %134 = math.sqrt %133 : vector<16x1xf32>
    %cst_64 = arith.constant 9.99999997E-7 : f32
    %135 = vector.broadcast %cst_64 : f32 to vector<16x1xf32>
    %136 = arith.addf %134, %135 : vector<16x1xf32>
    %137 = tpu.reciprocal %136 {approx = true} : vector<16x1xf32> -> vector<16x1xf32>
    %138 = vector.broadcast %121 : vector<1x128xf32> to vector<16x128xf32>
    %139 = arith.mulf %138, %128 : vector<16x128xf32>
    %140 = vector.broadcast %137 : vector<16x1xf32> to vector<16x128xf32>
    %141 = arith.mulf %139, %140 : vector<16x128xf32>
    %142 = vector.broadcast %122 : vector<1x128xf32> to vector<16x128xf32>
    %143 = arith.addf %141, %142 : vector<16x128xf32>
    %144 = arith.truncf %143 : vector<16x128xf32> to vector<16x128xbf16>
    %c0_65 = arith.constant 0 : index
    %c0_66 = arith.constant 0 : index
    %145 = vector.load %arg12[%c0_65, %c0_66] : memref<128x256xbf16, #tpu.memory_space<vmem>>, vector<128x256xbf16>
    %cst_67 = arith.constant dense<0.000000e+00> : vector<16x256xf32>
    %146 = tpu.matmul %144, %145, %cst_67 {dimension_numbers = #tpu.dot_dimension_numbers<[1], [0], [0], [1], [0, 0, 1, 1], [], []>} : vector<16x128xbf16>, vector<128x256xbf16>, vector<16x256xf32> -> vector<16x256xf32>
    %c0_68 = arith.constant 0 : index
    %c0_69 = arith.constant 0 : index
    %147 = vector.load %arg13[%c0_68, %c0_69] : memref<1x256xf32, #tpu.memory_space<vmem>>, vector<1x256xf32>
    %148 = vector.broadcast %147 : vector<1x256xf32> to vector<16x256xf32>
    %149 = arith.addf %146, %148 : vector<16x256xf32>
    %cst_70 = arith.constant 0.000000e+00 : f32
    %150 = vector.broadcast %cst_70 : f32 to vector<16x256xf32>
    %151 = arith.maximumf %149, %150 : vector<16x256xf32>
    %152 = arith.truncf %151 : vector<16x256xf32> to vector<16x256xbf16>
    %c0_71 = arith.constant 0 : index
    %c0_72 = arith.constant 0 : index
    %153 = vector.load %arg14[%c0_71, %c0_72] : memref<256x128xbf16, #tpu.memory_space<vmem>>, vector<256x128xbf16>
    %cst_73 = arith.constant dense<0.000000e+00> : vector<16x128xf32>
    %154 = tpu.matmul %152, %153, %cst_73 {dimension_numbers = #tpu.dot_dimension_numbers<[1], [0], [0], [1], [0, 0, 1, 1], [], []>} : vector<16x256xbf16>, vector<256x128xbf16>, vector<16x128xf32> -> vector<16x128xf32>
    %c0_74 = arith.constant 0 : index
    %c0_75 = arith.constant 0 : index
    %155 = vector.load %arg15[%c0_74, %c0_75] : memref<1x128xf32, #tpu.memory_space<vmem>>, vector<1x128xf32>
    %156 = vector.broadcast %155 : vector<1x128xf32> to vector<16x128xf32>
    %157 = arith.addf %154, %156 : vector<16x128xf32>
    %158 = arith.addf %143, %157 : vector<16x128xf32>
    %c0_76 = arith.constant 0 : index
    %c0_77 = arith.constant 0 : index
    %159 = vector.load %arg18[%c0_76, %c0_77] : memref<1x128xf32, #tpu.memory_space<vmem>>, vector<1x128xf32>
    %c0_78 = arith.constant 0 : index
    %c0_79 = arith.constant 0 : index
    %160 = vector.load %arg19[%c0_78, %c0_79] : memref<1x128xf32, #tpu.memory_space<vmem>>, vector<1x128xf32>
    %cst_80 = arith.constant dense<0.000000e+00> : vector<16xf32>
    %161 = vector.multi_reduction <add>, %158, %cst_80 [1] : vector<16x128xf32> to vector<16xf32>
    %162 = vector.shape_cast %161 : vector<16xf32> to vector<16x1xf32>
    %cst_81 = arith.constant 1.280000e+02 : f32
    %163 = vector.broadcast %cst_81 : f32 to vector<16x1xf32>
    %164 = arith.divf %162, %163 : vector<16x1xf32>
    %165 = vector.broadcast %164 : vector<16x1xf32> to vector<16x128xf32>
    %166 = arith.subf %158, %165 : vector<16x128xf32>
    %167 = arith.mulf %166, %166 : vector<16x128xf32>
    %cst_82 = arith.constant dense<0.000000e+00> : vector<16xf32>
    %168 = vector.multi_reduction <add>, %167, %cst_82 [1] : vector<16x128xf32> to vector<16xf32>
    %169 = vector.shape_cast %168 : vector<16xf32> to vector<16x1xf32>
    %cst_83 = arith.constant 0.00787401571 : f32
    %170 = vector.broadcast %cst_83 : f32 to vector<16x1xf32>
    %171 = arith.mulf %169, %170 : vector<16x1xf32>
    %172 = math.sqrt %171 : vector<16x1xf32>
    %cst_84 = arith.constant 9.99999997E-7 : f32
    %173 = vector.broadcast %cst_84 : f32 to vector<16x1xf32>
    %174 = arith.addf %172, %173 : vector<16x1xf32>
    %175 = tpu.reciprocal %174 {approx = true} : vector<16x1xf32> -> vector<16x1xf32>
    %176 = vector.broadcast %159 : vector<1x128xf32> to vector<16x128xf32>
    %177 = arith.mulf %176, %166 : vector<16x128xf32>
    %178 = vector.broadcast %175 : vector<16x1xf32> to vector<16x128xf32>
    %179 = arith.mulf %177, %178 : vector<16x128xf32>
    %180 = vector.broadcast %160 : vector<1x128xf32> to vector<16x128xf32>
    %181 = arith.addf %179, %180 : vector<16x128xf32>
    %c0_85 = arith.constant 0 : index
    %c0_86 = arith.constant 0 : index
    %c0_87 = arith.constant 0 : index
    %182 = vector.load %arg20[%c0_85, %c0_86, %c0_87] : memref<1x16x128xf32, #tpu.memory_space<vmem>>, vector<1x16x128xf32>
    %183 = vector.shape_cast %182 : vector<1x16x128xf32> to vector<16x128xf32>
    %184 = vector.shape_cast %181 : vector<16x128xf32> to vector<1x16x128xf32>
    tpu.vector_store %arg20[%c0_85, %c0_86, %c0_87], %184 {strides = array<i32>} : memref<1x16x128xf32, #tpu.memory_space<vmem>>, vector<1x16x128xf32>,
    return
  }
  func.func @transform_0(%arg0: i32) -> (i32, i32, i32) {
    %c0_i32 = arith.constant 0 : i32
    %c0_i32_0 = arith.constant 0 : i32
    %c0_i32_1 = arith.constant 0 : i32
    return %arg0, %c0_i32, %c0_i32_0 : i32, i32, i32
  }
  func.func @transform_1(%arg0: i32) -> (i32, i32) {
    %c0_i32 = arith.constant 0 : i32
    %c0_i32_0 = arith.constant 0 : i32
    %c0_i32_1 = arith.constant 0 : i32
    return %c0_i32, %c0_i32_0 : i32, i32
  }
  func.func @transform_2(%arg0: i32) -> (i32, i32, i32) {
    %c0_i32 = arith.constant 0 : i32
    %c0_i32_0 = arith.constant 0 : i32
    %c0_i32_1 = arith.constant 0 : i32
    return %arg0, %c0_i32, %c0_i32_0 : i32, i32, i32
  }
  func.func @transform_3(%arg0: i32) -> (i32, i32) {
    %c0_i32 = arith.constant 0 : i32
    %c0_i32_0 = arith.constant 0 : i32
    %c0_i32_1 = arith.constant 0 : i32
    return %c0_i32, %c0_i32_0 : i32, i32
  }
  func.func @transform_4(%arg0: i32) -> (i32, i32) {
    %c0_i32 = arith.constant 0 : i32
    %c0_i32_0 = arith.constant 0 : i32
    %c0_i32_1 = arith.constant 0 : i32
    return %c0_i32, %c0_i32_0 : i32, i32
  }
  func.func @transform_5(%arg0: i32) -> (i32, i32) {
    %c0_i32 = arith.constant 0 : i32
    %c0_i32_0 = arith.constant 0 : i32
    %c0_i32_1 = arith.constant 0 : i32
    return %c0_i32, %c0_i32_0 : i32, i32
  }
  func.func @transform_6(%arg0: i32) -> (i32, i32) {
    %c0_i32 = arith.constant 0 : i32
    %c0_i32_0 = arith.constant 0 : i32
    %c0_i32_1 = arith.constant 0 : i32
    return %c0_i32, %c0_i32_0 : i32, i32
  }
  func.func @transform_7(%arg0: i32) -> (i32, i32) {
    %c0_i32 = arith.constant 0 : i32
    %c0_i32_0 = arith.constant 0 : i32
    %c0_i32_1 = arith.constant 0 : i32
    return %c0_i32, %c0_i32_0 : i32, i32
  }
  func.func @transform_8(%arg0: i32) -> (i32, i32) {
    %c0_i32 = arith.constant 0 : i32
    %c0_i32_0 = arith.constant 0 : i32
    %c0_i32_1 = arith.constant 0 : i32
    return %c0_i32, %c0_i32_0 : i32, i32
  }
  func.func @transform_9(%arg0: i32) -> (i32, i32) {
    %c0_i32 = arith.constant 0 : i32
    %c0_i32_0 = arith.constant 0 : i32
    %c0_i32_1 = arith.constant 0 : i32
    return %c0_i32, %c0_i32_0 : i32, i32
  }
  func.func @transform_10(%arg0: i32) -> (i32, i32) {
    %c0_i32 = arith.constant 0 : i32
    %c0_i32_0 = arith.constant 0 : i32
    %c0_i32_1 = arith.constant 0 : i32
    return %c0_i32, %c0_i32_0 : i32, i32
  }
  func.func @transform_11(%arg0: i32) -> (i32, i32) {
    %c0_i32 = arith.constant 0 : i32
    %c0_i32_0 = arith.constant 0 : i32
    %c0_i32_1 = arith.constant 0 : i32
    return %c0_i32, %c0_i32_0 : i32, i32
  }
  func.func @transform_12(%arg0: i32) -> (i32, i32) {
    %c0_i32 = arith.constant 0 : i32
    %c0_i32_0 = arith.constant 0 : i32
    %c0_i32_1 = arith.constant 0 : i32
    return %c0_i32, %c0_i32_0 : i32, i32
  }
  func.func @transform_13(%arg0: i32) -> (i32, i32) {
    %c0_i32 = arith.constant 0 : i32
    %c0_i32_0 = arith.constant 0 : i32
    %c0_i32_1 = arith.constant 0 : i32
    return %c0_i32, %c0_i32_0 : i32, i32
  }
  func.func @transform_14(%arg0: i32) -> (i32, i32) {
    %c0_i32 = arith.constant 0 : i32
    %c0_i32_0 = arith.constant 0 : i32
    %c0_i32_1 = arith.constant 0 : i32
    return %c0_i32, %c0_i32_0 : i32, i32
  }
  func.func @transform_15(%arg0: i32) -> (i32, i32) {
    %c0_i32 = arith.constant 0 : i32
    %c0_i32_0 = arith.constant 0 : i32
    %c0_i32_1 = arith.constant 0 : i32
    return %c0_i32, %c0_i32_0 : i32, i32
  }
  func.func @transform_16(%arg0: i32) -> (i32, i32) {
    %c0_i32 = arith.constant 0 : i32
    %c0_i32_0 = arith.constant 0 : i32
    %c0_i32_1 = arith.constant 0 : i32
    return %c0_i32, %c0_i32_0 : i32, i32
  }
  func.func @transform_17(%arg0: i32) -> (i32, i32) {
    %c0_i32 = arith.constant 0 : i32
    %c0_i32_0 = arith.constant 0 : i32
    %c0_i32_1 = arith.constant 0 : i32
    return %c0_i32, %c0_i32_0 : i32, i32
  }
  func.func @transform_18(%arg0: i32) -> (i32, i32) {
    %c0_i32 = arith.constant 0 : i32
    %c0_i32_0 = arith.constant 0 : i32
    %c0_i32_1 = arith.constant 0 : i32
    return %c0_i32, %c0_i32_0 : i32, i32
  }
  func.func @transform_19(%arg0: i32) -> (i32, i32, i32) {
    %c0_i32 = arith.constant 0 : i32
    %c0_i32_0 = arith.constant 0 : i32
    %c0_i32_1 = arith.constant 0 : i32
    return %arg0, %c0_i32, %c0_i32_0 : i32, i32, i32
  }
}

</mosaic_0001>

<llo_original>
// kernel: tpu_custom_call.1
$region0: #{tpu_custom_call.1}
  #allocation0 [shape = 'u32[]', space=smem, size = 0x4, offset = 0x4, fixed_abs, tag = 'smem constant byte address 0x4 - core index']
  #allocation1 [shape = 'u32[72,128]{1,0:T(1,128)}', space=vmem, size = 0x9000, scoped, tag = 'internal scratch']
  #allocation2 [shape = 'f32[16,128]{1,0:T(8,128)}', space=vmem, size = 0x2000, scoped, tag = 'scratch operand']
  %s0 = inlined_call_operand.hbm [shape: f32[2,16,64], index: 0, kind: input, shape index: {}]
  %s1 = inlined_call_operand.hbm [shape: f32[16,64], index: 1, kind: input, shape index: {}]
  %s2 = inlined_call_operand.hbm [shape: f32[2,1,16], index: 2, kind: input, shape index: {}]
  %s3 = inlined_call_operand.hbm [shape: bf16[64,128], index: 3, kind: input, shape index: {}]
  %s4 = inlined_call_operand.vmem [shape: f32[1,128], index: 4, kind: input, shape index: {}]
  %s5 = inlined_call_operand.hbm [shape: bf16[64,128], index: 5, kind: input, shape index: {}]
  %s6 = inlined_call_operand.vmem [shape: f32[1,128], index: 6, kind: input, shape index: {}]
  %s7 = inlined_call_operand.hbm [shape: bf16[64,128], index: 7, kind: input, shape index: {}]
  %s8 = inlined_call_operand.vmem [shape: f32[1,128], index: 8, kind: input, shape index: {}]
  %s9 = inlined_call_operand.hbm [shape: bf16[128,128], index: 9, kind: input, shape index: {}]
  %s10 = inlined_call_operand.vmem [shape: f32[1,128], index: 10, kind: input, shape index: {}]
  %s11 = inlined_call_operand.hbm [shape: bf16[128,256], index: 11, kind: input, shape index: {}]
  %s12 = inlined_call_operand.vmem [shape: f32[1,256], index: 12, kind: input, shape index: {}]
  %s13 = inlined_call_operand.hbm [shape: bf16[256,128], index: 13, kind: input, shape index: {}]
  %s14 = inlined_call_operand.vmem [shape: f32[1,128], index: 14, kind: input, shape index: {}]
  %s15 = inlined_call_operand.vmem [shape: f32[1,128], index: 15, kind: input, shape index: {}]
  %s16 = inlined_call_operand.vmem [shape: f32[1,128], index: 16, kind: input, shape index: {}]
  %s17 = inlined_call_operand.vmem [shape: f32[1,128], index: 17, kind: input, shape index: {}]
  %s18 = inlined_call_operand.vmem [shape: f32[1,128], index: 18, kind: input, shape index: {}]
  %s19 = inlined_call_operand.hbm [shape: f32[2,16,128], index: 19, kind: output, shape index: {}]
  %s20 = sld [smem:[#allocation0]]
  $region145: #{tpu_custom_call.1} parent=0
    _
  %s22 = ssub.s32 1, %s20
  %s23 = scalar_select 0, %s22, %s20
  $region1: #{tpu_custom_call.1} parent=0
    #allocation3 [shape = 'u8[16384]{0}', space=vmem, size = 0x4000, scoped, tag = 'input window, operand 0']
    #allocation4 [shape = 's32[2]{0}', space=sflag, size = 0x8, scoped, tag = 'scoped memory for tpu_custom_call.1']
    #allocation5 [shape = 's32[2]{0}', space=sflag, size = 0x8, scoped, tag = 'scoped memory for tpu_custom_call.1']
    #allocation6 [shape = 'u8[8192]{0}', space=vmem, size = 0x2000, scoped, tag = 'input window, operand 1, single buffered']
    #allocation7 [shape = 's32[1]{0}', space=sflag, size = 0x4, scoped, tag = 'scoped memory for tpu_custom_call.1']
    #allocation8 [shape = 'u8[1024]{0}', space=vmem, size = 0x400, scoped, tag = 'input window, operand 2']
    #allocation9 [shape = 'u8[16384]{0}', space=vmem, size = 0x4000, scoped, tag = 'input window, operand 3, single buffered']
    #allocation10 [shape = 'u8[16384]{0}', space=vmem, size = 0x4000, scoped, tag = 'input window, operand 5, single buffered']
    #allocation11 [shape = 's32[1]{0}', space=sflag, size = 0x4, scoped, tag = 'scoped memory for tpu_custom_call.1']
    #allocation12 [shape = 'u8[16384]{0}', space=vmem, size = 0x4000, scoped, tag = 'input window, operand 7, single buffered']
    #allocation13 [shape = 'u8[32768]{0}', space=vmem, size = 0x8000, scoped, tag = 'input window, operand 9, single buffered']
    #allocation14 [shape = 's32[1]{0}', space=sflag, size = 0x4, scoped, tag = 'scoped memory for tpu_custom_call.1']
    #allocation15 [shape = 'u8[65536]{0}', space=vmem, size = 0x10000, scoped, tag = 'input window, operand 11, single buffered']
    #allocation16 [shape = 'u8[65536]{0}', space=vmem, size = 0x10000, scoped, tag = 'input window, operand 13, single buffered']
    #allocation17 [shape = 's32[1]{0}', space=sflag, size = 0x4, scoped, tag = 'scoped memory for tpu_custom_call.1']
    #allocation18 [shape = 'u8[16384]{0}', space=vmem, size = 0x4000, scoped, tag = 'output window, operand 0']
    %24 = vsyncpa [#allocation4], 0
    %s25 = scalar_lea.sflag [#allocation4], 1
    %26 = vsyncpa %s25, 0
    %27 = vsyncpa [#allocation7], 0
    %28 = vsyncpa [#allocation11], 0
    %29 = vsyncpa [#allocation14], 0
    %30 = vsyncpa [#allocation17], 0
    %31 = vsyncpa [#allocation5], 0
    %s32 = scalar_lea.sflag [#allocation5], 1
    %33 = vsyncpa %s32, 0
    loop: start=0, step=1, limit=4
    $region2: #{tpu_custom_call.1} parent=1 // loop_pre_header
      _
    $region3: #{tpu_custom_call.1} parent=1 // loop_header
      %s35 = sphi 0, %s39
      %p36 = scmp.ge.s32.totalorder %s35, 4
      %s45 = sphi 0, %s47
      %s48 = sphi 0, %s45
      %s49 = sphi 0, %s48
      %s65 = sphi 0, %s49
      %s69 = sphi 0, %s69
      %s71 = sphi 0, %s69
      %s72 = sphi 0, %s71
      %s86 = sphi 0, %s72
      %s92 = sphi 0, %s94
      %s95 = sphi 0, %s92
      %s96 = sphi 0, %s95
      %s112 = sphi 0, %s96
      %s116 = sphi 0, %s116
      %s118 = sphi 0, %s116
      %s119 = sphi 0, %s118
      %s133 = sphi 0, %s119
      %s137 = sphi 0, %s137
      %s139 = sphi 0, %s137
      %s140 = sphi 0, %s139
      %s154 = sphi 0, %s140
      %s158 = sphi 0, %s158
      %s160 = sphi 0, %s158
      %s161 = sphi 0, %s160
      %s175 = sphi 0, %s161
      %s179 = sphi 0, %s179
      %s181 = sphi 0, %s179
      %s182 = sphi 0, %s181
      %s196 = sphi 0, %s182
      %s200 = sphi 0, %s200
      %s202 = sphi 0, %s200
      %s203 = sphi 0, %s202
      %s217 = sphi 0, %s203
      %s221 = sphi 0, %s221
      %s223 = sphi 0, %s221
      %s224 = sphi 0, %s223
      %s238 = sphi 0, %s224
      %s242 = sphi 0, %s242
      %s244 = sphi 0, %s242
      %s245 = sphi 0, %s244
      %s259 = sphi 0, %s245
      %s263 = sphi 0, %s263
      %s265 = sphi 0, %s263
      %s266 = sphi 0, %s265
      %s280 = sphi 0, %s266
      %s284 = sphi 0, %s284
      %s286 = sphi 0, %s284
      %s287 = sphi 0, %s286
      %s301 = sphi 0, %s287
      %s305 = sphi 0, %s305
      %s307 = sphi 0, %s305
      %s308 = sphi 0, %s307
      %s322 = sphi 0, %s308
      %s326 = sphi 0, %s326
      %s328 = sphi 0, %s326
      %s329 = sphi 0, %s328
      %s343 = sphi 0, %s329
      %s347 = sphi 0, %s347
      %s349 = sphi 0, %s347
      %s350 = sphi 0, %s349
      %s364 = sphi 0, %s350
      %s368 = sphi 0, %s368
      %s370 = sphi 0, %s368
      %s371 = sphi 0, %s370
      %s385 = sphi 0, %s371
      %s389 = sphi 0, %s389
      %s391 = sphi 0, %s389
      %s392 = sphi 0, %s391
      %s406 = sphi 0, %s392
      %s410 = sphi 0, %s410
      %s412 = sphi 0, %s410
      %s413 = sphi 0, %s412
      %s427 = sphi 0, %s413
      %s431 = sphi 0, %s431
      %s433 = sphi 0, %s431
      %s434 = sphi 0, %s433
      %s448 = sphi 0, %s434
      %s454 = sphi 0, %s456
      %s457 = sphi 0, %s454
      %s458 = sphi 0, %s457
      %s474 = sphi 0, %s458
    $region4: #{tpu_custom_call.1} parent=1 // loop_header_branch
      %38 = sbr.rel (%p36) target = $region8
    $region5: #{tpu_custom_call.1} parent=1 // loop_body
      %s40 = ssub.s32 %s35, 1
      %s41 = ssub.s32 %s35, 2
      %s42 = sadd.s32 %s35, 1
      %s43 = ssub.s32 %s35, %s42
      %p44 = scmp.eq.s32.totalorder %s43, 0
      %s46 = sadd.s32 %s45, 1
      %s47 = scalar_select %p44, %s45, %s46
      %p50 = pneg %p44
      %p51 = scmp.eq.s32.totalorder %s35, 1
      %p52 = por %p50, %p51
      %p53 = scmp.ne.s32.totalorder %s45, %s48
      %p54 = scmp.eq.s32.totalorder %s35, 0
      %p55 = por %p53, %p54
      %p56 = scmp.ne.s32.totalorder %s45, %s48
      %p57 = scmp.eq.s32.totalorder %s40, 1
      %p58 = por %p56, %p57
      %p59 = scmp.ne.s32.totalorder %s48, %s49
      %p60 = scmp.eq.s32.totalorder %s40, 0
      %p61 = por %p59, %p60
      %p62 = scmp.ne.s32.totalorder %s48, %s49
      %p63 = scmp.eq.s32.totalorder %s41, 1
      %p64 = por %p62, %p63
      %p66 = scmp.ne.s32.totalorder %s49, %s65
      %p67 = scmp.eq.s32.totalorder %s41, 0
      %p68 = por %p66, %p67
      %s70 = sadd.s32 %s69, 1
      %p73 = scmp.eq.s32.totalorder %s35, 1
      %p74 = scmp.ne.s32.totalorder %s69, %s71
      %p75 = scmp.eq.s32.totalorder %s35, 0
      %p76 = por %p74, %p75
      %p77 = scmp.ne.s32.totalorder %s69, %s71
      %p78 = scmp.eq.s32.totalorder %s40, 1
      %p79 = por %p77, %p78
      %p80 = scmp.ne.s32.totalorder %s71, %s72
      %p81 = scmp.eq.s32.totalorder %s40, 0
      %p82 = por %p80, %p81
      %p83 = scmp.ne.s32.totalorder %s71, %s72
      %p84 = scmp.eq.s32.totalorder %s41, 1
      %p85 = por %p83, %p84
      %p87 = scmp.ne.s32.totalorder %s72, %s86
      %p88 = scmp.eq.s32.totalorder %s41, 0
      %p89 = por %p87, %p88
      %s90 = ssub.s32 %s35, %s42
      %p91 = scmp.eq.s32.totalorder %s90, 0
      %s93 = sadd.s32 %s92, 1
      %s94 = scalar_select %p91, %s92, %s93
      %p97 = pneg %p91
      %p98 = scmp.eq.s32.totalorder %s35, 1
      %p99 = por %p97, %p98
      %p100 = scmp.ne.s32.totalorder %s92, %s95
      %p101 = scmp.eq.s32.totalorder %s35, 0
      %p102 = por %p100, %p101
      %p103 = scmp.ne.s32.totalorder %s92, %s95
      %p104 = scmp.eq.s32.totalorder %s40, 1
      %p105 = por %p103, %p104
      %p106 = scmp.ne.s32.totalorder %s95, %s96
      %p107 = scmp.eq.s32.totalorder %s40, 0
      %p108 = por %p106, %p107
      %p109 = scmp.ne.s32.totalorder %s95, %s96
      %p110 = scmp.eq.s32.totalorder %s41, 1
      %p111 = por %p109, %p110
      %p113 = scmp.ne.s32.totalorder %s96, %s112
      %p114 = scmp.eq.s32.totalorder %s41, 0
      %p115 = por %p113, %p114
      %s117 = sadd.s32 %s116, 1
      %p120 = scmp.eq.s32.totalorder %s35, 1
      %p121 = scmp.ne.s32.totalorder %s116, %s118
      %p122 = scmp.eq.s32.totalorder %s35, 0
      %p123 = por %p121, %p122
      %p124 = scmp.ne.s32.totalorder %s116, %s118
      %p125 = scmp.eq.s32.totalorder %s40, 1
      %p126 = por %p124, %p125
      %p127 = scmp.ne.s32.totalorder %s118, %s119
      %p128 = scmp.eq.s32.totalorder %s40, 0
      %p129 = por %p127, %p128
      %p130 = scmp.ne.s32.totalorder %s118, %s119
      %p131 = scmp.eq.s32.totalorder %s41, 1
      %p132 = por %p130, %p131
      %p134 = scmp.ne.s32.totalorder %s119, %s133
      %p135 = scmp.eq.s32.totalorder %s41, 0
      %p136 = por %p134, %p135
      %s138 = sadd.s32 %s137, 1
      %p141 = scmp.eq.s32.totalorder %s35, 1
      %p142 = scmp.ne.s32.totalorder %s137, %s139
      %p143 = scmp.eq.s32.totalorder %s35, 0
      %p144 = por %p142, %p143
      %p145 = scmp.ne.s32.totalorder %s137, %s139
      %p146 = scmp.eq.s32.totalorder %s40, 1
      %p147 = por %p145, %p146
      %p148 = scmp.ne.s32.totalorder %s139, %s140
      %p149 = scmp.eq.s32.totalorder %s40, 0
      %p150 = por %p148, %p149
      %p151 = scmp.ne.s32.totalorder %s139, %s140
      %p152 = scmp.eq.s32.totalorder %s41, 1
      %p153 = por %p151, %p152
      %p155 = scmp.ne.s32.totalorder %s140, %s154
      %p156 = scmp.eq.s32.totalorder %s41, 0
      %p157 = por %p155, %p156
      %s159 = sadd.s32 %s158, 1
      %p162 = scmp.eq.s32.totalorder %s35, 1
      %p163 = scmp.ne.s32.totalorder %s158, %s160
      %p164 = scmp.eq.s32.totalorder %s35, 0
      %p165 = por %p163, %p164
      %p166 = scmp.ne.s32.totalorder %s158, %s160
      %p167 = scmp.eq.s32.totalorder %s40, 1
      %p168 = por %p166, %p167
      %p169 = scmp.ne.s32.totalorder %s160, %s161
      %p170 = scmp.eq.s32.totalorder %s40, 0
      %p171 = por %p169, %p170
      %p172 = scmp.ne.s32.totalorder %s160, %s161
      %p173 = scmp.eq.s32.totalorder %s41, 1
      %p174 = por %p172, %p173
      %p176 = scmp.ne.s32.totalorder %s161, %s175
      %p177 = scmp.eq.s32.totalorder %s41, 0
      %p178 = por %p176, %p177
      %s180 = sadd.s32 %s179, 1
      %p183 = scmp.eq.s32.totalorder %s35, 1
      %p184 = scmp.ne.s32.totalorder %s179, %s181
      %p185 = scmp.eq.s32.totalorder %s35, 0
      %p186 = por %p184, %p185
      %p187 = scmp.ne.s32.totalorder %s179, %s181
      %p188 = scmp.eq.s32.totalorder %s40, 1
      %p189 = por %p187, %p188
      %p190 = scmp.ne.s32.totalorder %s181, %s182
      %p191 = scmp.eq.s32.totalorder %s40, 0
      %p192 = por %p190, %p191
      %p193 = scmp.ne.s32.totalorder %s181, %s182
      %p194 = scmp.eq.s32.totalorder %s41, 1
      %p195 = por %p193, %p194
      %p197 = scmp.ne.s32.totalorder %s182, %s196
      %p198 = scmp.eq.s32.totalorder %s41, 0
      %p199 = por %p197, %p198
      %s201 = sadd.s32 %s200, 1
      %p204 = scmp.eq.s32.totalorder %s35, 1
      %p205 = scmp.ne.s32.totalorder %s200, %s202
      %p206 = scmp.eq.s32.totalorder %s35, 0
      %p207 = por %p205, %p206
      %p208 = scmp.ne.s32.totalorder %s200, %s202
      %p209 = scmp.eq.s32.totalorder %s40, 1
      %p210 = por %p208, %p209
      %p211 = scmp.ne.s32.totalorder %s202, %s203
      %p212 = scmp.eq.s32.totalorder %s40, 0
      %p213 = por %p211, %p212
      %p214 = scmp.ne.s32.totalorder %s202, %s203
      %p215 = scmp.eq.s32.totalorder %s41, 1
      %p216 = por %p214, %p215
      %p218 = scmp.ne.s32.totalorder %s203, %s217
      %p219 = scmp.eq.s32.totalorder %s41, 0
      %p220 = por %p218, %p219
      %s222 = sadd.s32 %s221, 1
      %p225 = scmp.eq.s32.totalorder %s35, 1
      %p226 = scmp.ne.s32.totalorder %s221, %s223
      %p227 = scmp.eq.s32.totalorder %s35, 0
      %p228 = por %p226, %p227
      %p229 = scmp.ne.s32.totalorder %s221, %s223
      %p230 = scmp.eq.s32.totalorder %s40, 1
      %p231 = por %p229, %p230
      %p232 = scmp.ne.s32.totalorder %s223, %s224
      %p233 = scmp.eq.s32.totalorder %s40, 0
      %p234 = por %p232, %p233
      %p235 = scmp.ne.s32.totalorder %s223, %s224
      %p236 = scmp.eq.s32.totalorder %s41, 1
      %p237 = por %p235, %p236
      %p239 = scmp.ne.s32.totalorder %s224, %s238
      %p240 = scmp.eq.s32.totalorder %s41, 0
      %p241 = por %p239, %p240
      %s243 = sadd.s32 %s242, 1
      %p246 = scmp.eq.s32.totalorder %s35, 1
      %p247 = scmp.ne.s32.totalorder %s242, %s244
      %p248 = scmp.eq.s32.totalorder %s35, 0
      %p249 = por %p247, %p248
      %p250 = scmp.ne.s32.totalorder %s242, %s244
      %p251 = scmp.eq.s32.totalorder %s40, 1
      %p252 = por %p250, %p251
      %p253 = scmp.ne.s32.totalorder %s244, %s245
      %p254 = scmp.eq.s32.totalorder %s40, 0
      %p255 = por %p253, %p254
      %p256 = scmp.ne.s32.totalorder %s244, %s245
      %p257 = scmp.eq.s32.totalorder %s41, 1
      %p258 = por %p256, %p257
      %p260 = scmp.ne.s32.totalorder %s245, %s259
      %p261 = scmp.eq.s32.totalorder %s41, 0
      %p262 = por %p260, %p261
      %s264 = sadd.s32 %s263, 1
      %p267 = scmp.eq.s32.totalorder %s35, 1
      %p268 = scmp.ne.s32.totalorder %s263, %s265
      %p269 = scmp.eq.s32.totalorder %s35, 0
      %p270 = por %p268, %p269
      %p271 = scmp.ne.s32.totalorder %s263, %s265
      %p272 = scmp.eq.s32.totalorder %s40, 1
      %p273 = por %p271, %p272
      %p274 = scmp.ne.s32.totalorder %s265, %s266
      %p275 = scmp.eq.s32.totalorder %s40, 0
      %p276 = por %p274, %p275
      %p277 = scmp.ne.s32.totalorder %s265, %s266
      %p278 = scmp.eq.s32.totalorder %s41, 1
      %p279 = por %p277, %p278
      %p281 = scmp.ne.s32.totalorder %s266, %s280
      %p282 = scmp.eq.s32.totalorder %s41, 0
      %p283 = por %p281, %p282
      %s285 = sadd.s32 %s284, 1
      %p288 = scmp.eq.s32.totalorder %s35, 1
      %p289 = scmp.ne.s32.totalorder %s284, %s286
      %p290 = scmp.eq.s32.totalorder %s35, 0
      %p291 = por %p289, %p290
      %p292 = scmp.ne.s32.totalorder %s284, %s286
      %p293 = scmp.eq.s32.totalorder %s40, 1
      %p294 = por %p292, %p293
      %p295 = scmp.ne.s32.totalorder %s286, %s287
      %p296 = scmp.eq.s32.totalorder %s40, 0
      %p297 = por %p295, %p296
      %p298 = scmp.ne.s32.totalorder %s286, %s287
      %p299 = scmp.eq.s32.totalorder %s41, 1
      %p300 = por %p298, %p299
      %p302 = scmp.ne.s32.totalorder %s287, %s301
      %p303 = scmp.eq.s32.totalorder %s41, 0
      %p304 = por %p302, %p303
      %s306 = sadd.s32 %s305, 1
      %p309 = scmp.eq.s32.totalorder %s35, 1
      %p310 = scmp.ne.s32.totalorder %s305, %s307
      %p311 = scmp.eq.s32.totalorder %s35, 0
      %p312 = por %p310, %p311
      %p313 = scmp.ne.s32.totalorder %s305, %s307
      %p314 = scmp.eq.s32.totalorder %s40, 1
      %p315 = por %p313, %p314
      %p316 = scmp.ne.s32.totalorder %s307, %s308
      %p317 = scmp.eq.s32.totalorder %s40, 0
      %p318 = por %p316, %p317
      %p319 = scmp.ne.s32.totalorder %s307, %s308
      %p320 = scmp.eq.s32.totalorder %s41, 1
      %p321 = por %p319, %p320
      %p323 = scmp.ne.s32.totalorder %s308, %s322
      %p324 = scmp.eq.s32.totalorder %s41, 0
      %p325 = por %p323, %p324
      %s327 = sadd.s32 %s326, 1
      %p330 = scmp.eq.s32.totalorder %s35, 1
      %p331 = scmp.ne.s32.totalorder %s326, %s328
      %p332 = scmp.eq.s32.totalorder %s35, 0
      %p333 = por %p331, %p332
      %p334 = scmp.ne.s32.totalorder %s326, %s328
      %p335 = scmp.eq.s32.totalorder %s40, 1
      %p336 = por %p334, %p335
      %p337 = scmp.ne.s32.totalorder %s328, %s329
      %p338 = scmp.eq.s32.totalorder %s40, 0
      %p339 = por %p337, %p338
      %p340 = scmp.ne.s32.totalorder %s328, %s329
      %p341 = scmp.eq.s32.totalorder %s41, 1
      %p342 = por %p340, %p341
      %p344 = scmp.ne.s32.totalorder %s329, %s343
      %p345 = scmp.eq.s32.totalorder %s41, 0
      %p346 = por %p344, %p345
      %s348 = sadd.s32 %s347, 1
      %p351 = scmp.eq.s32.totalorder %s35, 1
      %p352 = scmp.ne.s32.totalorder %s347, %s349
      %p353 = scmp.eq.s32.totalorder %s35, 0
      %p354 = por %p352, %p353
      %p355 = scmp.ne.s32.totalorder %s347, %s349
      %p356 = scmp.eq.s32.totalorder %s40, 1
      %p357 = por %p355, %p356
      %p358 = scmp.ne.s32.totalorder %s349, %s350
      %p359 = scmp.eq.s32.totalorder %s40, 0
      %p360 = por %p358, %p359
      %p361 = scmp.ne.s32.totalorder %s349, %s350
      %p362 = scmp.eq.s32.totalorder %s41, 1
      %p363 = por %p361, %p362
      %p365 = scmp.ne.s32.totalorder %s350, %s364
      %p366 = scmp.eq.s32.totalorder %s41, 0
      %p367 = por %p365, %p366
      %s369 = sadd.s32 %s368, 1
      %p372 = scmp.eq.s32.totalorder %s35, 1
      %p373 = scmp.ne.s32.totalorder %s368, %s370
      %p374 = scmp.eq.s32.totalorder %s35, 0
      %p375 = por %p373, %p374
      %p376 = scmp.ne.s32.totalorder %s368, %s370
      %p377 = scmp.eq.s32.totalorder %s40, 1
      %p378 = por %p376, %p377
      %p379 = scmp.ne.s32.totalorder %s370, %s371
      %p380 = scmp.eq.s32.totalorder %s40, 0
      %p381 = por %p379, %p380
      %p382 = scmp.ne.s32.totalorder %s370, %s371
      %p383 = scmp.eq.s32.totalorder %s41, 1
      %p384 = por %p382, %p383
      %p386 = scmp.ne.s32.totalorder %s371, %s385
      %p387 = scmp.eq.s32.totalorder %s41, 0
      %p388 = por %p386, %p387
      %s390 = sadd.s32 %s389, 1
      %p393 = scmp.eq.s32.totalorder %s35, 1
      %p394 = scmp.ne.s32.totalorder %s389, %s391
      %p395 = scmp.eq.s32.totalorder %s35, 0
      %p396 = por %p394, %p395
      %p397 = scmp.ne.s32.totalorder %s389, %s391
      %p398 = scmp.eq.s32.totalorder %s40, 1
      %p399 = por %p397, %p398
      %p400 = scmp.ne.s32.totalorder %s391, %s392
      %p401 = scmp.eq.s32.totalorder %s40, 0
      %p402 = por %p400, %p401
      %p403 = scmp.ne.s32.totalorder %s391, %s392
      %p404 = scmp.eq.s32.totalorder %s41, 1
      %p405 = por %p403, %p404
      %p407 = scmp.ne.s32.totalorder %s392, %s406
      %p408 = scmp.eq.s32.totalorder %s41, 0
      %p409 = por %p407, %p408
      %s411 = sadd.s32 %s410, 1
      %p414 = scmp.eq.s32.totalorder %s35, 1
      %p415 = scmp.ne.s32.totalorder %s410, %s412
      %p416 = scmp.eq.s32.totalorder %s35, 0
      %p417 = por %p415, %p416
      %p418 = scmp.ne.s32.totalorder %s410, %s412
      %p419 = scmp.eq.s32.totalorder %s40, 1
      %p420 = por %p418, %p419
      %p421 = scmp.ne.s32.totalorder %s412, %s413
      %p422 = scmp.eq.s32.totalorder %s40, 0
      %p423 = por %p421, %p422
      %p424 = scmp.ne.s32.totalorder %s412, %s413
      %p425 = scmp.eq.s32.totalorder %s41, 1
      %p426 = por %p424, %p425
      %p428 = scmp.ne.s32.totalorder %s413, %s427
      %p429 = scmp.eq.s32.totalorder %s41, 0
      %p430 = por %p428, %p429
      %s432 = sadd.s32 %s431, 1
      %p435 = scmp.eq.s32.totalorder %s35, 1
      %p436 = scmp.ne.s32.totalorder %s431, %s433
      %p437 = scmp.eq.s32.totalorder %s35, 0
      %p438 = por %p436, %p437
      %p439 = scmp.ne.s32.totalorder %s431, %s433
      %p440 = scmp.eq.s32.totalorder %s40, 1
      %p441 = por %p439, %p440
      %p442 = scmp.ne.s32.totalorder %s433, %s434
      %p443 = scmp.eq.s32.totalorder %s40, 0
      %p444 = por %p442, %p443
      %p445 = scmp.ne.s32.totalorder %s433, %s434
      %p446 = scmp.eq.s32.totalorder %s41, 1
      %p447 = por %p445, %p446
      %p449 = scmp.ne.s32.totalorder %s434, %s448
      %p450 = scmp.eq.s32.totalorder %s41, 0
      %p451 = por %p449, %p450
      %s452 = ssub.s32 %s35, %s42
      %p453 = scmp.eq.s32.totalorder %s452, 0
      %s455 = sadd.s32 %s454, 1
      %s456 = scalar_select %p453, %s454, %s455
      %p459 = pneg %p453
      %p460 = scmp.eq.s32.totalorder %s35, 1
      %p461 = por %p459, %p460
      %p462 = scmp.ne.s32.totalorder %s454, %s457
      %p463 = scmp.eq.s32.totalorder %s35, 0
      %p464 = por %p462, %p463
      %p465 = scmp.ne.s32.totalorder %s454, %s457
      %p466 = scmp.eq.s32.totalorder %s40, 1
      %p467 = por %p465, %p466
      %p468 = scmp.ne.s32.totalorder %s457, %s458
      %p469 = scmp.eq.s32.totalorder %s40, 0
      %p470 = por %p468, %p469
      %p471 = scmp.ne.s32.totalorder %s457, %s458
      %p472 = scmp.eq.s32.totalorder %s41, 1
      %p473 = por %p471, %p472
      %p475 = scmp.ne.s32.totalorder %s458, %s474
      %p476 = scmp.eq.s32.totalorder %s41, 0
      %p477 = por %p475, %p476
      %p478 = scmp.le.s32.totalorder 1, %s35
      %p479 = scmp.lt.s32.totalorder %s35, 3
      %p480 = pnand %p478, %p479
      %p481 = pneg %p480
      // Predicated region
      $region9: #{tpu_custom_call.1} parent=5 // pred_check
        _
      $region10: #{tpu_custom_call.1} parent=5 // pred_check_branch
        %483 = sbr.rel (%p480) target = $region12
      $region11: #{tpu_custom_call.1} parent=5 // pred_region
        %s484 = ssub.s32 %s35, 1
        // Predicated region
        $region13: #{tpu_custom_call.1} parent=11 // pred_check
          %p485 = pneg %p82
        $region14: #{tpu_custom_call.1} parent=11 // pred_check_branch
          %487 = sbr.rel (%p485) target = $region16
        $region15: #{tpu_custom_call.1} parent=11 // pred_region
          %489 = vsyncadd [#allocation7], 0
          %s490 = sshll.u32 %s1, 4
          %s491 = int_to_ptr.hbm [resolvable:$true] %s490
          %s492 = sshll.u32 [#allocation6], 4
          %s493 = int_to_ptr.vmem [resolvable:$true] %s492
          %498 = dma.hbm_to_vmem [thread:$0]  %s491, 256, %s493, [#allocation7], 128, 128, 8
        $region16: #{tpu_custom_call.1} parent=11 // pred_fallthru
          _
        // Predicated region
        $region17: #{tpu_custom_call.1} parent=11 // pred_check
          %p499 = pneg %p129
        $region18: #{tpu_custom_call.1} parent=11 // pred_check_branch
          %501 = sbr.rel (%p499) target = $region20
        $region19: #{tpu_custom_call.1} parent=11 // pred_region
          %503 = vsyncadd [#allocation7], 0
          %s504 = sshll.u32 %s3, 4
          %s505 = int_to_ptr.hbm [resolvable:$true] %s504
          %s506 = sshll.u32 [#allocation9], 4
          %s507 = int_to_ptr.vmem [resolvable:$true] %s506
          %512 = dma.hbm_to_vmem [thread:$0]  %s505, 512, %s507, [#allocation7], 64, 64, 4
        $region20: #{tpu_custom_call.1} parent=11 // pred_fallthru
          _
        // Predicated region
        $region21: #{tpu_custom_call.1} parent=11 // pred_check
          %p513 = pneg %p150
        $region22: #{tpu_custom_call.1} parent=11 // pred_check_branch
          %515 = sbr.rel (%p513) target = $region24
        $region23: #{tpu_custom_call.1} parent=11 // pred_region
          _
        $region24: #{tpu_custom_call.1} parent=11 // pred_fallthru
          _
        // Predicated region
        $region25: #{tpu_custom_call.1} parent=11 // pred_check
          %p516 = pneg %p171
        $region26: #{tpu_custom_call.1} parent=11 // pred_check_branch
          %518 = sbr.rel (%p516) target = $region28
        $region27: #{tpu_custom_call.1} parent=11 // pred_region
          %520 = vsyncadd [#allocation11], 0
          %s521 = sshll.u32 %s5, 4
          %s522 = int_to_ptr.hbm [resolvable:$true] %s521
          %s523 = sshll.u32 [#allocation10], 4
          %s524 = int_to_ptr.vmem [resolvable:$true] %s523
          %529 = dma.hbm_to_vmem [thread:$0]  %s522, 512, %s524, [#allocation11], 64, 64, 4
        $region28: #{tpu_custom_call.1} parent=11 // pred_fallthru
          _
        // Predicated region
        $region29: #{tpu_custom_call.1} parent=11 // pred_check
          %p530 = pneg %p192
        $region30: #{tpu_custom_call.1} parent=11 // pred_check_branch
          %532 = sbr.rel (%p530) target = $region32
        $region31: #{tpu_custom_call.1} parent=11 // pred_region
          _
        $region32: #{tpu_custom_call.1} parent=11 // pred_fallthru
          _
        // Predicated region
        $region33: #{tpu_custom_call.1} parent=11 // pred_check
          %p533 = pneg %p213
        $region34: #{tpu_custom_call.1} parent=11 // pred_check_branch
          %535 = sbr.rel (%p533) target = $region36
        $region35: #{tpu_custom_call.1} parent=11 // pred_region
          %537 = vsyncadd [#allocation11], 0
          %s538 = sshll.u32 %s7, 4
          %s539 = int_to_ptr.hbm [resolvable:$true] %s538
          %s540 = sshll.u32 [#allocation12], 4
          %s541 = int_to_ptr.vmem [resolvable:$true] %s540
          %546 = dma.hbm_to_vmem [thread:$0]  %s539, 512, %s541, [#allocation11], 64, 64, 4
        $region36: #{tpu_custom_call.1} parent=11 // pred_fallthru
          _
        // Predicated region
        $region37: #{tpu_custom_call.1} parent=11 // pred_check
          %p547 = pneg %p234
        $region38: #{tpu_custom_call.1} parent=11 // pred_check_branch
          %549 = sbr.rel (%p547) target = $region40
        $region39: #{tpu_custom_call.1} parent=11 // pred_region
          _
        $region40: #{tpu_custom_call.1} parent=11 // pred_fallthru
          _
        // Predicated region
        $region41: #{tpu_custom_call.1} parent=11 // pred_check
          %p550 = pneg %p255
        $region42: #{tpu_custom_call.1} parent=11 // pred_check_branch
          %552 = sbr.rel (%p550) target = $region44
        $region43: #{tpu_custom_call.1} parent=11 // pred_region
          %554 = vsyncadd [#allocation14], 0
          %s555 = sshll.u32 %s9, 4
          %s556 = int_to_ptr.hbm [resolvable:$true] %s555
          %s557 = sshll.u32 [#allocation13], 4
          %s558 = int_to_ptr.vmem [resolvable:$true] %s557
          %563 = dma.hbm_to_vmem [thread:$0]  %s556, 1024, %s558, [#allocation14], 64, 64, 4
        $region44: #{tpu_custom_call.1} parent=11 // pred_fallthru
          _
        // Predicated region
        $region45: #{tpu_custom_call.1} parent=11 // pred_check
          %p564 = pneg %p276
        $region46: #{tpu_custom_call.1} parent=11 // pred_check_branch
          %566 = sbr.rel (%p564) target = $region48
        $region47: #{tpu_custom_call.1} parent=11 // pred_region
          _
        $region48: #{tpu_custom_call.1} parent=11 // pred_fallthru
          _
        // Predicated region
        $region49: #{tpu_custom_call.1} parent=11 // pred_check
          %p567 = pneg %p297
        $region50: #{tpu_custom_call.1} parent=11 // pred_check_branch
          %569 = sbr.rel (%p567) target = $region52
        $region51: #{tpu_custom_call.1} parent=11 // pred_region
          %571 = vsyncadd [#allocation14], 0
          %s572 = sshll.u32 %s11, 4
          %s573 = int_to_ptr.hbm [resolvable:$true] %s572
          %s574 = sshll.u32 [#allocation15], 4
          %s575 = int_to_ptr.vmem [resolvable:$true] %s574
          %580 = dma.hbm_to_vmem [thread:$0]  %s573, 2048, %s575, [#allocation14], 128, 128, 8
        $region52: #{tpu_custom_call.1} parent=11 // pred_fallthru
          _
        // Predicated region
        $region53: #{tpu_custom_call.1} parent=11 // pred_check
          %p581 = pneg %p318
        $region54: #{tpu_custom_call.1} parent=11 // pred_check_branch
          %583 = sbr.rel (%p581) target = $region56
        $region55: #{tpu_custom_call.1} parent=11 // pred_region
          _
        $region56: #{tpu_custom_call.1} parent=11 // pred_fallthru
          _
        // Predicated region
        $region57: #{tpu_custom_call.1} parent=11 // pred_check
          %p584 = pneg %p339
        $region58: #{tpu_custom_call.1} parent=11 // pred_check_branch
          %586 = sbr.rel (%p584) target = $region60
        $region59: #{tpu_custom_call.1} parent=11 // pred_region
          %588 = vsyncadd [#allocation17], 0
          %s589 = sshll.u32 %s13, 4
          %s590 = int_to_ptr.hbm [resolvable:$true] %s589
          %s591 = sshll.u32 [#allocation16], 4
          %s592 = int_to_ptr.vmem [resolvable:$true] %s591
          %597 = dma.hbm_to_vmem [thread:$0]  %s590, 2048, %s592, [#allocation17], 64, 64, 4
        $region60: #{tpu_custom_call.1} parent=11 // pred_fallthru
          _
        // Predicated region
        $region61: #{tpu_custom_call.1} parent=11 // pred_check
          %p598 = pneg %p360
        $region62: #{tpu_custom_call.1} parent=11 // pred_check_branch
          %600 = sbr.rel (%p598) target = $region64
        $region63: #{tpu_custom_call.1} parent=11 // pred_region
          _
        $region64: #{tpu_custom_call.1} parent=11 // pred_fallthru
          _
        // Predicated region
        $region65: #{tpu_custom_call.1} parent=11 // pred_check
          %p601 = pneg %p381
        $region66: #{tpu_custom_call.1} parent=11 // pred_check_branch
          %603 = sbr.rel (%p601) target = $region68
        $region67: #{tpu_custom_call.1} parent=11 // pred_region
          _
        $region68: #{tpu_custom_call.1} parent=11 // pred_fallthru
          _
        // Predicated region
        $region69: #{tpu_custom_call.1} parent=11 // pred_check
          %p604 = pneg %p402
        $region70: #{tpu_custom_call.1} parent=11 // pred_check_branch
          %606 = sbr.rel (%p604) target = $region72
        $region71: #{tpu_custom_call.1} parent=11 // pred_region
          _
        $region72: #{tpu_custom_call.1} parent=11 // pred_fallthru
          _
        // Predicated region
        $region73: #{tpu_custom_call.1} parent=11 // pred_check
          %p607 = pneg %p423
        $region74: #{tpu_custom_call.1} parent=11 // pred_check_branch
          %609 = sbr.rel (%p607) target = $region76
        $region75: #{tpu_custom_call.1} parent=11 // pred_region
          _
        $region76: #{tpu_custom_call.1} parent=11 // pred_fallthru
          _
        // Predicated region
        $region77: #{tpu_custom_call.1} parent=11 // pred_check
          %p610 = pneg %p444
        $region78: #{tpu_custom_call.1} parent=11 // pred_check_branch
          %612 = sbr.rel (%p610) target = $region80
        $region79: #{tpu_custom_call.1} parent=11 // pred_region
          _
        $region80: #{tpu_custom_call.1} parent=11 // pred_fallthru
          _
      $region12: #{tpu_custom_call.1} parent=5 // pred_fallthru
        _
      %p613 = scmp.lt.s32.totalorder %s35, 2
      // Predicated region
      $region81: #{tpu_custom_call.1} parent=5 // pred_check
        %p614 = pneg %p613
      $region82: #{tpu_custom_call.1} parent=5 // pred_check_branch
        %616 = sbr.rel (%p614) target = $region84
      $region83: #{tpu_custom_call.1} parent=5 // pred_region
        // Predicated region
        $region85: #{tpu_custom_call.1} parent=83 // pred_check
          %p617 = pneg %p55
        $region86: #{tpu_custom_call.1} parent=83 // pred_check_branch
          %619 = sbr.rel (%p617) target = $region88
        $region87: #{tpu_custom_call.1} parent=83 // pred_region
          %s620 = sand.u32 %s35, 1
          %s621 = scalar_lea.sflag [#allocation4], %s620
          %s622 = sand.u32 %s45, 1
          %s623 = smul.addr %s622, 16
          %s624 = scalar_lea.vmem [#allocation3], %s623
          %626 = vsyncadd %s621, 0
          %s627 = smul.addr %s35, 2
          %s628 = smul.addr %s627, 8
          %s629 = scalar_lea.hbm %s0, %s628
          %s630 = sshll.u32 %s629, 4
          %s631 = int_to_ptr.hbm [resolvable:$true] %s630
          %s632 = sshll.u32 %s624, 4
          %s633 = int_to_ptr.vmem [resolvable:$true] %s632
          %638 = dma.hbm_to_vmem [thread:$0]  %s631, 256, %s633, %s621, 128, 128, 8
        $region88: #{tpu_custom_call.1} parent=83 // pred_fallthru
          _
        // Predicated region
        $region89: #{tpu_custom_call.1} parent=83 // pred_check
          %p639 = pneg %p102
        $region90: #{tpu_custom_call.1} parent=83 // pred_check_branch
          %641 = sbr.rel (%p639) target = $region92
        $region91: #{tpu_custom_call.1} parent=83 // pred_region
          %s642 = sand.u32 %s35, 1
          %s643 = scalar_lea.sflag [#allocation4], %s642
          %s644 = sand.u32 %s92, 1
          %s645 = scalar_lea.vmem [#allocation8], %s644
          %647 = vsyncadd %s643, 0
          %s648 = scalar_lea.hbm %s2, %s35
          %s650 = sshll.u32 %s648, 4
          %s651 = int_to_ptr.hbm [resolvable:$true] %s650
          %s652 = sshll.u32 %s645, 4
          %s653 = int_to_ptr.vmem [resolvable:$true] %s652
          %655 = dma.hbm_to_vmem [thread:$0]  %s651, 16, %s653, %s643
        $region92: #{tpu_custom_call.1} parent=83 // pred_fallthru
          _
      $region84: #{tpu_custom_call.1} parent=5 // pred_fallthru
        _
      %p656 = scmp.le.s32.totalorder 1, %s35
      %p657 = scmp.lt.s32.totalorder %s35, 3
      %p658 = pnand %p656, %p657
      %p659 = pneg %p658
      // Predicated region
      $region93: #{tpu_custom_call.1} parent=5 // pred_check
        _
      $region94: #{tpu_custom_call.1} parent=5 // pred_check_branch
        %661 = sbr.rel (%p658) target = $region96
      $region95: #{tpu_custom_call.1} parent=5 // pred_region
        %s662 = ssub.s32 %s35, 1
        %s663 = sand.u32 %s40, 1
        %s664 = scalar_lea.sflag [#allocation4], %s663
        %s665 = sand.u32 %s48, 1
        %s666 = smul.addr %s665, 16
        %s667 = scalar_lea.vmem [#allocation3], %s666
        // Predicated region
        $region97: #{tpu_custom_call.1} parent=95 // pred_check
          %p668 = pneg %p61
        $region98: #{tpu_custom_call.1} parent=95 // pred_check_branch
          %670 = sbr.rel (%p668) target = $region100
        $region99: #{tpu_custom_call.1} parent=95 // pred_region
          %672 = dma.done %s664, 256
        $region100: #{tpu_custom_call.1} parent=95 // pred_fallthru
          _
        // Predicated region
        $region101: #{tpu_custom_call.1} parent=95 // pred_check
          %p673 = pneg %p82
        $region102: #{tpu_custom_call.1} parent=95 // pred_check_branch
          %675 = sbr.rel (%p673) target = $region104
        $region103: #{tpu_custom_call.1} parent=95 // pred_region
          %677 = dma.done [#allocation7], 256
        $region104: #{tpu_custom_call.1} parent=95 // pred_fallthru
          _
        %s678 = sand.u32 %s40, 1
        %s679 = scalar_lea.sflag [#allocation4], %s678
        %s680 = sand.u32 %s95, 1
        %s681 = scalar_lea.vmem [#allocation8], %s680
        // Predicated region
        $region105: #{tpu_custom_call.1} parent=95 // pred_check
          %p682 = pneg %p108
        $region106: #{tpu_custom_call.1} parent=95 // pred_check_branch
          %684 = sbr.rel (%p682) target = $region108
        $region107: #{tpu_custom_call.1} parent=95 // pred_region
          %686 = dma.done %s679, 16
        $region108: #{tpu_custom_call.1} parent=95 // pred_fallthru
          _
        // Predicated region
        $region109: #{tpu_custom_call.1} parent=95 // pred_check
          %p687 = pneg %p129
        $region110: #{tpu_custom_call.1} parent=95 // pred_check_branch
          %689 = sbr.rel (%p687) target = $region112
        $region111: #{tpu_custom_call.1} parent=95 // pred_region
          %691 = dma.done [#allocation7], 512
        $region112: #{tpu_custom_call.1} parent=95 // pred_fallthru
          _
        // Predicated region
        $region113: #{tpu_custom_call.1} parent=95 // pred_check
          %p692 = pneg %p171
        $region114: #{tpu_custom_call.1} parent=95 // pred_check_branch
          %694 = sbr.rel (%p692) target = $region116
        $region115: #{tpu_custom_call.1} parent=95 // pred_region
          %696 = dma.done [#allocation11], 512
        $region116: #{tpu_custom_call.1} parent=95 // pred_fallthru
          _
        // Predicated region
        $region117: #{tpu_custom_call.1} parent=95 // pred_check
          %p697 = pneg %p213
        $region118: #{tpu_custom_call.1} parent=95 // pred_check_branch
          %699 = sbr.rel (%p697) target = $region120
        $region119: #{tpu_custom_call.1} parent=95 // pred_region
          %701 = dma.done [#allocation11], 512
        $region120: #{tpu_custom_call.1} parent=95 // pred_fallthru
          _
        // Predicated region
        $region121: #{tpu_custom_call.1} parent=95 // pred_check
          %p702 = pneg %p255
        $region122: #{tpu_custom_call.1} parent=95 // pred_check_branch
          %704 = sbr.rel (%p702) target = $region124
        $region123: #{tpu_custom_call.1} parent=95 // pred_region
          %706 = dma.done [#allocation14], 1024
        $region124: #{tpu_custom_call.1} parent=95 // pred_fallthru
          _
        // Predicated region
        $region125: #{tpu_custom_call.1} parent=95 // pred_check
          %p707 = pneg %p297
        $region126: #{tpu_custom_call.1} parent=95 // pred_check_branch
          %709 = sbr.rel (%p707) target = $region128
        $region127: #{tpu_custom_call.1} parent=95 // pred_region
          %711 = dma.done [#allocation14], 2048
        $region128: #{tpu_custom_call.1} parent=95 // pred_fallthru
          _
        // Predicated region
        $region129: #{tpu_custom_call.1} parent=95 // pred_check
          %p712 = pneg %p339
        $region130: #{tpu_custom_call.1} parent=95 // pred_check_branch
          %714 = sbr.rel (%p712) target = $region132
        $region131: #{tpu_custom_call.1} parent=95 // pred_region
          %716 = dma.done [#allocation17], 2048
        $region132: #{tpu_custom_call.1} parent=95 // pred_fallthru
          _
        %s717 = sand.u32 %s40, 1
        %s718 = scalar_lea.sflag [#allocation4], %s717
        %s719 = sand.u32 %s48, 1
        %s720 = smul.addr %s719, 16
        %s721 = scalar_lea.vmem [#allocation3], %s720
        %p722 = pneg %p61
        %p723 = pneg %p58
        %p724 = pneg %p82
        %p725 = pneg %p79
        %s726 = sand.u32 %s40, 1
        %s727 = scalar_lea.sflag [#allocation4], %s726
        %s728 = sand.u32 %s95, 1
        %s729 = scalar_lea.vmem [#allocation8], %s728
        %p730 = pneg %p108
        %p731 = pneg %p105
        %p732 = pneg %p129
        %p733 = pneg %p126
        %p734 = pneg %p150
        %p735 = pneg %p147
        %p736 = pneg %p171
        %p737 = pneg %p168
        %p738 = pneg %p192
        %p739 = pneg %p189
        %p740 = pneg %p213
        %p741 = pneg %p210
        %p742 = pneg %p234
        %p743 = pneg %p231
        %p744 = pneg %p255
        %p745 = pneg %p252
        %p746 = pneg %p276
        %p747 = pneg %p273
        %p748 = pneg %p297
        %p749 = pneg %p294
        %p750 = pneg %p318
        %p751 = pneg %p315
        %p752 = pneg %p339
        %p753 = pneg %p336
        %p754 = pneg %p360
        %p755 = pneg %p357
        %p756 = pneg %p381
        %p757 = pneg %p378
        %p758 = pneg %p402
        %p759 = pneg %p399
        %p760 = pneg %p423
        %p761 = pneg %p420
        %p762 = pneg %p444
        %p763 = pneg %p441
        %p764 = pneg %p470
        %p765 = pneg %p467
        %s766 = sand.u32 %s457, 1
        %s767 = scalar_lea.sflag [#allocation5], %s766
        %s768 = sand.u32 %s457, 1
        %s769 = smul.addr %s768, 16
        %s770 = scalar_lea.vmem [#allocation18], %s769
        %v772 = vld [vmem:[%s667] sm:$0xff]
        %v773 = vld [vmem:[%s667 + $0x8] sm:$0xff]
        %v774 = vld [vmem:[#allocation6] sm:$0xff]
        %v775 = vld [vmem:[#allocation6 + $0x8] sm:$0xff]
        %v776 = vadd.f32 %v772, %v774
        %v777 = vadd.f32 %v773, %v775
        %v778 = vpack.c.bf16 %v777, %v776
        %v779 = vld [vmem:[#allocation9] sm:$0xf]
        %v780 = vld [vmem:[#allocation9 + $0x4] sm:$0xf]
        %v781 = vld [vmem:[#allocation9 + $0x8] sm:$0xf]
        %v782 = vld [vmem:[#allocation9 + $0xc] sm:$0xf]
        %v783 = vld [vmem:[#allocation9 + $0x10] sm:$0xf]
        %v784 = vld [vmem:[#allocation9 + $0x14] sm:$0xf]
        %v785 = vld [vmem:[#allocation9 + $0x18] sm:$0xf]
        %v786 = vld [vmem:[#allocation9 + $0x1c] sm:$0xf]
        %v787 = vld [vmem:[%s4] sm:$0x1]
        %v789 = vperm.slane %v787, 0
        %v799 = vunpack.c.l.b16 %v779
        %v800 = vunpack.c.l.b16 %v780
        %v801 = vunpack.c.l.b16 %v781
        %v802 = vunpack.c.l.b16 %v782
        %v803 = vunpack.c.l.b16 %v783
        %v804 = vunpack.c.l.b16 %v784
        %v805 = vunpack.c.l.b16 %v785
        %v806 = vunpack.c.l.b16 %v786
        %v807 = vpack.c.b16 %v800, %v799
        %v808 = vpack.c.b16 %v802, %v801
        %v809 = vpack.c.b16 %v804, %v803
        %v810 = vpack.c.b16 %v806, %v805
        %vm815 = vcmask 523264
        %v817 = vsel %vm815, %v778, 0
        %819 = vmatpush.bf16.msra.mxu0 0
        %820 = vmatpush.bf16.msra.mxu0 0
        %821 = vmatpush.bf16.msra.mxu0 0
        %822 = vmatpush.bf16.msra.mxu0 0
        %823 = vmatpush.bf16.msra.mxu0 %v810
        %824 = vmatpush.bf16.msra.mxu0 %v809
        %825 = vmatpush.bf16.msra.mxu0 %v808
        %826 = vmatpush.bf16.msra.mxu0 %v807
        %827 = vmatmul.bf16.gmra.mxu0 %v817
        %v828 = vpop.f32.mrf.mxu0
        %v829 = vadd.f32 %v789, %v828
        %v830 = vpop.f32.mrf.mxu0
        %v831 = vadd.f32 %v789, %v830
        %832 = vdwg.mxu0
        %v833 = vld [vmem:[#allocation10] sm:$0xf]
        %v834 = vld [vmem:[#allocation10 + $0x4] sm:$0xf]
        %v835 = vld [vmem:[#allocation10 + $0x8] sm:$0xf]
        %v836 = vld [vmem:[#allocation10 + $0xc] sm:$0xf]
        %v837 = vld [vmem:[#allocation10 + $0x10] sm:$0xf]
        %v838 = vld [vmem:[#allocation10 + $0x14] sm:$0xf]
        %v839 = vld [vmem:[#allocation10 + $0x18] sm:$0xf]
        %v840 = vld [vmem:[#allocation10 + $0x1c] sm:$0xf]
        %v841 = vld [vmem:[%s6] sm:$0x1]
        %v843 = vperm.slane %v841, 0
        %v853 = vunpack.c.l.b16 %v833
        %v854 = vunpack.c.l.b16 %v834
        %v855 = vunpack.c.l.b16 %v835
        %v856 = vunpack.c.l.b16 %v836
        %v857 = vunpack.c.l.b16 %v837
        %v858 = vunpack.c.l.b16 %v838
        %v859 = vunpack.c.l.b16 %v839
        %v860 = vunpack.c.l.b16 %v840
        %v861 = vpack.c.b16 %v854, %v853
        %v862 = vpack.c.b16 %v856, %v855
        %v863 = vpack.c.b16 %v858, %v857
        %v864 = vpack.c.b16 %v860, %v859
        %869 = vmatpush.bf16.msra.mxu0 0
        %870 = vmatpush.bf16.msra.mxu0 0
        %871 = vmatpush.bf16.msra.mxu0 0
        %872 = vmatpush.bf16.msra.mxu0 0
        %873 = vmatpush.bf16.msra.mxu0 %v864
        %874 = vmatpush.bf16.msra.mxu0 %v863
        %875 = vmatpush.bf16.msra.mxu0 %v862
        %876 = vmatpush.bf16.msra.mxu0 %v861
        %877 = vmatmul.bf16.gmra.mxu0 %v817
        %v878 = vpop.f32.mrf.mxu0
        %v879 = vadd.f32 %v843, %v878
        %v880 = vpop.f32.mrf.mxu0
        %v881 = vadd.f32 %v843, %v880
        %882 = vdwg.mxu0
        %v883 = vld [vmem:[#allocation12] sm:$0xf]
        %v884 = vld [vmem:[#allocation12 + $0x4] sm:$0xf]
        %v885 = vld [vmem:[#allocation12 + $0x8] sm:$0xf]
        %v886 = vld [vmem:[#allocation12 + $0xc] sm:$0xf]
        %v887 = vld [vmem:[#allocation12 + $0x10] sm:$0xf]
        %v888 = vld [vmem:[#allocation12 + $0x14] sm:$0xf]
        %v889 = vld [vmem:[#allocation12 + $0x18] sm:$0xf]
        %v890 = vld [vmem:[#allocation12 + $0x1c] sm:$0xf]
        %v891 = vld [vmem:[%s8] sm:$0x1]
        %v893 = vperm.slane %v891, 0
        %v903 = vunpack.c.l.b16 %v883
        %v904 = vunpack.c.l.b16 %v884
        %v905 = vunpack.c.l.b16 %v885
        %v906 = vunpack.c.l.b16 %v886
        %v907 = vunpack.c.l.b16 %v887
        %v908 = vunpack.c.l.b16 %v888
        %v909 = vunpack.c.l.b16 %v889
        %v910 = vunpack.c.l.b16 %v890
        %v911 = vpack.c.b16 %v904, %v903
        %v912 = vpack.c.b16 %v906, %v905
        %v913 = vpack.c.b16 %v908, %v907
        %v914 = vpack.c.b16 %v910, %v909
        %919 = vmatpush.bf16.msra.mxu0 0
        %920 = vmatpush.bf16.msra.mxu0 0
        %921 = vmatpush.bf16.msra.mxu0 0
        %922 = vmatpush.bf16.msra.mxu0 0
        %923 = vmatpush.bf16.msra.mxu0 %v914
        %924 = vmatpush.bf16.msra.mxu0 %v913
        %925 = vmatpush.bf16.msra.mxu0 %v912
        %926 = vmatpush.bf16.msra.mxu0 %v911
        %927 = vmatmul.bf16.gmra.mxu0 %v817
        %v928 = vpop.f32.mrf.mxu0
        %v929 = vadd.f32 %v893, %v928
        %v930 = vpop.f32.mrf.mxu0
        %v931 = vadd.f32 %v893, %v930
        %932 = vdwg.mxu0
        %v933 = vpack.c.bf16 %v829, %v829
        %v934 = vpack.c.bf16 %v831, %v831
        %v935 = vpack.c.bf16 %v879, %v879
        %v936 = vpack.c.bf16 %v881, %v881
        %v937 = vpack.c.bf16 %v929, %v929
        %v938 = vpack.c.bf16 %v931, %v931
        %v939 = vld [vmem:[%s681] sm:$0x1]
        %vm940 = vcmp.eq.f32.partialorder %v939, 0.0
        %v941 = vsel %vm940, -inf, 0.0
        %v944 = vunpack.c.l.b16 %v933
        %v945 = vunpack.c.l.b16 %v934
        %v946 = vpack.c.b16 %v945, %v944
        %v949 = vunpack.c.l.b16 %v935
        %v950 = vunpack.c.l.b16 %v936
        %v951 = vpack.c.b16 %v950, %v949
        %vm952 = vcmask 261120
        %v954 = vsel %vm952, %v946, 0
        %v957 = vsel %vm952, %v951, 0
        %959 = vmatpush.bf16.xpose.msra.mxu0 0
        %960 = vmatpush.bf16.xpose.msra.mxu0 0
        %961 = vmatpush.bf16.xpose.msra.mxu0 0
        %962 = vmatpush.bf16.xpose.msra.mxu0 0
        %963 = vmatpush.bf16.xpose.msra.mxu0 0
        %964 = vmatpush.bf16.xpose.msra.mxu0 0
        %965 = vmatpush.bf16.xpose.msra.mxu0 0
        %966 = vmatpush.bf16.xpose.msra.mxu0 %v957
        %967 = vmatmul.bf16.gmra.mxu0 %v954
        %v968 = vpop.f32.mrf.mxu0
        %v969 = vadd.f32 0.0, %v968
        %v970 = vpop.f32.mrf.mxu0
        %v971 = vadd.f32 0.0, %v970
        %972 = vdwg.mxu0
        %v973 = vmul.f32 %v969, 0.17677669
        %v974 = vmul.f32 %v971, 0.17677669
        %v976 = vperm.slane %v941, 0
        %v978 = vadd.f32 %v973, %v976
        %v979 = vadd.f32 %v974, %v976
        %vm980 = vcmask 130048
        %v981 = vsel %vm980, %v978, -inf
        %982 = vmax.xlane.f32.xlu0 %v981
        %v983 = vpop.xlane.xlu0 %982
        %v984 = vsel %vm980, %v979, -inf
        %985 = vmax.xlane.f32.xlu0 %v984
        %v986 = vpop.xlane.xlu0 %985
        %v987 = vsub.f32 %v978, %v983
        %v988 = vsub.f32 %v979, %v986
        %v989 = vmul.f32 %v987, 1.442695
        %v990 = vpow.pop %v989
        %v991 = vmul.f32 %v988, 1.442695
        %v992 = vpow.pop %v991
        %v993 = vsel %vm980, %v990, 0.0
        %994 = vadd.xlane.f32.xlu0 %v993
        %v995 = vpop.xlane.xlu0 %994
        %v996 = vsel %vm980, %v992, 0.0
        %997 = vadd.xlane.f32.xlu0 %v996
        %v998 = vpop.xlane.xlu0 %997
        %v999 = vrcp.pop %v995
        %v1000 = vrcp.pop %v998
        %v1001 = vmul.f32 %v990, %v999
        %v1002 = vmul.f32 %v992, %v1000
        %v1003 = vpack.c.bf16 %v1002, %v1001
        %v1006 = vunpack.c.l.b16 %v937
        %v1007 = vunpack.c.l.b16 %v938
        %v1008 = vpack.c.b16 %v1007, %v1006
        %v1011 = vsel %vm980, %v1003, 0
        %1013 = vmatpush.bf16.msra.mxu0 0
        %1014 = vmatpush.bf16.msra.mxu0 0
        %1015 = vmatpush.bf16.msra.mxu0 0
        %1016 = vmatpush.bf16.msra.mxu0 0
        %1017 = vmatpush.bf16.msra.mxu0 0
        %1018 = vmatpush.bf16.msra.mxu0 0
        %1019 = vmatpush.bf16.msra.mxu0 0
        %1020 = vmatpush.bf16.msra.mxu0 %v1008
        %1021 = vmatmul.bf16.gmra.mxu0 %v1011
        %v1022 = vpop.f32.mrf.mxu0
        %v1023 = vadd.f32 0.0, %v1022
        %v1024 = vpop.f32.mrf.mxu0
        %v1025 = vadd.f32 0.0, %v1024
        %1026 = vdwg.mxu0
        %1027 = vst.msk [vmem:[#allocation2] sm:$0xff] %vm952, %v1023
        %1028 = vst.msk [vmem:[#allocation2 + $0x8] sm:$0xff] %vm952, %v1025
        %1029 = vrot.lane.b32.xlu0 %v946, 96
        %v1030 = vpop.permute.xlu0 %1029
        %1031 = vrot.lane.b32.xlu0 %v951, 96
        %v1032 = vpop.permute.xlu0 %1031
        %v1034 = vsel %vm952, %v1030, 0
        %v1037 = vsel %vm952, %v1032, 0
        %1039 = vmatpush.bf16.xpose.msra.mxu0 0
        %1040 = vmatpush.bf16.xpose.msra.mxu0 0
        %1041 = vmatpush.bf16.xpose.msra.mxu0 0
        %1042 = vmatpush.bf16.xpose.msra.mxu0 0
        %1043 = vmatpush.bf16.xpose.msra.mxu0 0
        %1044 = vmatpush.bf16.xpose.msra.mxu0 0
        %1045 = vmatpush.bf16.xpose.msra.mxu0 0
        %1046 = vmatpush.bf16.xpose.msra.mxu0 %v1037
        %1047 = vmatmul.bf16.gmra.mxu0 %v1034
        %v1048 = vpop.f32.mrf.mxu0
        %v1049 = vadd.f32 0.0, %v1048
        %v1050 = vpop.f32.mrf.mxu0
        %v1051 = vadd.f32 0.0, %v1050
        %1052 = vdwg.mxu0
        %v1053 = vmul.f32 %v1049, 0.17677669
        %v1054 = vmul.f32 %v1051, 0.17677669
        %v1055 = vadd.f32 %v1053, %v976
        %v1056 = vadd.f32 %v1054, %v976
        %v1057 = vsel %vm980, %v1055, -inf
        %1058 = vmax.xlane.f32.xlu0 %v1057
        %v1059 = vpop.xlane.xlu0 %1058
        %v1060 = vsel %vm980, %v1056, -inf
        %1061 = vmax.xlane.f32.xlu0 %v1060
        %v1062 = vpop.xlane.xlu0 %1061
        %v1063 = vsub.f32 %v1055, %v1059
        %v1064 = vsub.f32 %v1056, %v1062
        %v1065 = vmul.f32 %v1063, 1.442695
        %v1066 = vpow.pop %v1065
        %v1067 = vmul.f32 %v1064, 1.442695
        %v1068 = vpow.pop %v1067
        %v1069 = vsel %vm980, %v1066, 0.0
        %1070 = vadd.xlane.f32.xlu0 %v1069
        %v1071 = vpop.xlane.xlu0 %1070
        %v1072 = vsel %vm980, %v1068, 0.0
        %1073 = vadd.xlane.f32.xlu0 %v1072
        %v1074 = vpop.xlane.xlu0 %1073
        %v1075 = vrcp.pop %v1071
        %v1076 = vrcp.pop %v1074
        %v1077 = vmul.f32 %v1066, %v1075
        %v1078 = vmul.f32 %v1068, %v1076
        %v1079 = vpack.c.bf16 %v1078, %v1077
        %1080 = vrot.lane.b32.xlu0 %v1008, 96
        %v1081 = vpop.permute.xlu0 %1080
        %v1084 = vsel %vm980, %v1079, 0
        %1086 = vmatpush.bf16.msra.mxu0 0
        %1087 = vmatpush.bf16.msra.mxu0 0
        %1088 = vmatpush.bf16.msra.mxu0 0
        %1089 = vmatpush.bf16.msra.mxu0 0
        %1090 = vmatpush.bf16.msra.mxu0 0
        %1091 = vmatpush.bf16.msra.mxu0 0
        %1092 = vmatpush.bf16.msra.mxu0 0
        %1093 = vmatpush.bf16.msra.mxu0 %v1081
        %1094 = vmatmul.bf16.gmra.mxu0 %v1084
        %v1095 = vpop.f32.mrf.mxu0
        %v1096 = vadd.f32 0.0, %v1095
        %v1097 = vpop.f32.mrf.mxu0
        %v1098 = vadd.f32 0.0, %v1097
        %1099 = vdwg.mxu0
        %1102 = vrot.lane.b32.xlu0 %v1096, 32
        %v1103 = vpop.permute.xlu0 %1102
        %1104 = vrot.lane.b32.xlu0 %v1098, 32
        %v1105 = vpop.permute.xlu0 %1104
        %vm1108 = vcmask 523520
        %1109 = vst.msk [vmem:[#allocation2] sm:$0xff] %vm1108, %v1103
        %1110 = vst.msk [vmem:[#allocation2 + $0x8] sm:$0xff] %vm1108, %v1105
        %1111 = vrot.lane.b32.xlu0 %v946, 64
        %v1112 = vpop.permute.xlu0 %1111
        %1113 = vrot.lane.b32.xlu0 %v951, 64
        %v1114 = vpop.permute.xlu0 %1113
        %v1116 = vsel %vm952, %v1112, 0
        %v1119 = vsel %vm952, %v1114, 0
        %1121 = vmatpush.bf16.xpose.msra.mxu0 0
        %1122 = vmatpush.bf16.xpose.msra.mxu0 0
        %1123 = vmatpush.bf16.xpose.msra.mxu0 0
        %1124 = vmatpush.bf16.xpose.msra.mxu0 0
        %1125 = vmatpush.bf16.xpose.msra.mxu0 0
        %1126 = vmatpush.bf16.xpose.msra.mxu0 0
        %1127 = vmatpush.bf16.xpose.msra.mxu0 0
        %1128 = vmatpush.bf16.xpose.msra.mxu0 %v1119
        %1129 = vmatmul.bf16.gmra.mxu0 %v1116
        %v1130 = vpop.f32.mrf.mxu0
        %v1131 = vadd.f32 0.0, %v1130
        %v1132 = vpop.f32.mrf.mxu0
        %v1133 = vadd.f32 0.0, %v1132
        %1134 = vdwg.mxu0
        %v1135 = vmul.f32 %v1131, 0.17677669
        %v1136 = vmul.f32 %v1133, 0.17677669
        %v1137 = vadd.f32 %v1135, %v976
        %v1138 = vadd.f32 %v1136, %v976
        %v1139 = vsel %vm980, %v1137, -inf
        %1140 = vmax.xlane.f32.xlu0 %v1139
        %v1141 = vpop.xlane.xlu0 %1140
        %v1142 = vsel %vm980, %v1138, -inf
        %1143 = vmax.xlane.f32.xlu0 %v1142
        %v1144 = vpop.xlane.xlu0 %1143
        %v1145 = vsub.f32 %v1137, %v1141
        %v1146 = vsub.f32 %v1138, %v1144
        %v1147 = vmul.f32 %v1145, 1.442695
        %v1148 = vpow.pop %v1147
        %v1149 = vmul.f32 %v1146, 1.442695
        %v1150 = vpow.pop %v1149
        %v1151 = vsel %vm980, %v1148, 0.0
        %1152 = vadd.xlane.f32.xlu0 %v1151
        %v1153 = vpop.xlane.xlu0 %1152
        %v1154 = vsel %vm980, %v1150, 0.0
        %1155 = vadd.xlane.f32.xlu0 %v1154
        %v1156 = vpop.xlane.xlu0 %1155
        %v1157 = vrcp.pop %v1153
        %v1158 = vrcp.pop %v1156
        %v1159 = vmul.f32 %v1148, %v1157
        %v1160 = vmul.f32 %v1150, %v1158
        %v1161 = vpack.c.bf16 %v1160, %v1159
        %1162 = vrot.lane.b32.xlu0 %v1008, 64
        %v1163 = vpop.permute.xlu0 %1162
        %v1166 = vsel %vm980, %v1161, 0
        %1168 = vmatpush.bf16.msra.mxu0 0
        %1169 = vmatpush.bf16.msra.mxu0 0
        %1170 = vmatpush.bf16.msra.mxu0 0
        %1171 = vmatpush.bf16.msra.mxu0 0
        %1172 = vmatpush.bf16.msra.mxu0 0
        %1173 = vmatpush.bf16.msra.mxu0 0
        %1174 = vmatpush.bf16.msra.mxu0 0
        %1175 = vmatpush.bf16.msra.mxu0 %v1163
        %1176 = vmatmul.bf16.gmra.mxu0 %v1166
        %v1177 = vpop.f32.mrf.mxu0
        %v1178 = vadd.f32 0.0, %v1177
        %v1179 = vpop.f32.mrf.mxu0
        %v1180 = vadd.f32 0.0, %v1179
        %1181 = vdwg.mxu0
        %1184 = vrot.lane.b32.xlu0 %v1178, 64
        %v1185 = vpop.permute.xlu0 %1184
        %1186 = vrot.lane.b32.xlu0 %v1180, 64
        %v1187 = vpop.permute.xlu0 %1186
        %vm1190 = vcmask 785920
        %1191 = vst.msk [vmem:[#allocation2] sm:$0xff] %vm1190, %v1185
        %1192 = vst.msk [vmem:[#allocation2 + $0x8] sm:$0xff] %vm1190, %v1187
        %1193 = vrot.lane.b32.xlu0 %v946, 32
        %v1194 = vpop.permute.xlu0 %1193
        %1195 = vrot.lane.b32.xlu0 %v951, 32
        %v1196 = vpop.permute.xlu0 %1195
        %v1198 = vsel %vm952, %v1194, 0
        %v1201 = vsel %vm952, %v1196, 0
        %1203 = vmatpush.bf16.xpose.msra.mxu0 0
        %1204 = vmatpush.bf16.xpose.msra.mxu0 0
        %1205 = vmatpush.bf16.xpose.msra.mxu0 0
        %1206 = vmatpush.bf16.xpose.msra.mxu0 0
        %1207 = vmatpush.bf16.xpose.msra.mxu0 0
        %1208 = vmatpush.bf16.xpose.msra.mxu0 0
        %1209 = vmatpush.bf16.xpose.msra.mxu0 0
        %1210 = vmatpush.bf16.xpose.msra.mxu0 %v1201
        %1211 = vmatmul.bf16.gmra.mxu0 %v1198
        %v1212 = vpop.f32.mrf.mxu0
        %v1213 = vadd.f32 0.0, %v1212
        %v1214 = vpop.f32.mrf.mxu0
        %v1215 = vadd.f32 0.0, %v1214
        %1216 = vdwg.mxu0
        %v1217 = vmul.f32 %v1213, 0.17677669
        %v1218 = vmul.f32 %v1215, 0.17677669
        %v1219 = vadd.f32 %v1217, %v976
        %v1220 = vadd.f32 %v1218, %v976
        %v1221 = vsel %vm980, %v1219, -inf
        %1222 = vmax.xlane.f32.xlu0 %v1221
        %v1223 = vpop.xlane.xlu0 %1222
        %v1224 = vsel %vm980, %v1220, -inf
        %1225 = vmax.xlane.f32.xlu0 %v1224
        %v1226 = vpop.xlane.xlu0 %1225
        %v1227 = vsub.f32 %v1219, %v1223
        %v1228 = vsub.f32 %v1220, %v1226
        %v1229 = vmul.f32 %v1227, 1.442695
        %v1230 = vpow.pop %v1229
        %v1231 = vmul.f32 %v1228, 1.442695
        %v1232 = vpow.pop %v1231
        %v1233 = vsel %vm980, %v1230, 0.0
        %1234 = vadd.xlane.f32.xlu0 %v1233
        %v1235 = vpop.xlane.xlu0 %1234
        %v1236 = vsel %vm980, %v1232, 0.0
        %1237 = vadd.xlane.f32.xlu0 %v1236
        %v1238 = vpop.xlane.xlu0 %1237
        %v1239 = vrcp.pop %v1235
        %v1240 = vrcp.pop %v1238
        %v1241 = vmul.f32 %v1230, %v1239
        %v1242 = vmul.f32 %v1232, %v1240
        %v1243 = vpack.c.bf16 %v1242, %v1241
        %1244 = vrot.lane.b32.xlu0 %v1008, 32
        %v1245 = vpop.permute.xlu0 %1244
        %v1248 = vsel %vm980, %v1243, 0
        %1250 = vmatpush.bf16.msra.mxu0 0
        %1251 = vmatpush.bf16.msra.mxu0 0
        %1252 = vmatpush.bf16.msra.mxu0 0
        %1253 = vmatpush.bf16.msra.mxu0 0
        %1254 = vmatpush.bf16.msra.mxu0 0
        %1255 = vmatpush.bf16.msra.mxu0 0
        %1256 = vmatpush.bf16.msra.mxu0 0
        %1257 = vmatpush.bf16.msra.mxu0 %v1245
        %1258 = vmatmul.bf16.gmra.mxu0 %v1248
        %v1259 = vpop.f32.mrf.mxu0
        %v1260 = vadd.f32 0.0, %v1259
        %v1261 = vpop.f32.mrf.mxu0
        %v1262 = vadd.f32 0.0, %v1261
        %1263 = vdwg.mxu0
        %1266 = vrot.lane.b32.xlu0 %v1260, 96
        %v1267 = vpop.permute.xlu0 %1266
        %1268 = vrot.lane.b32.xlu0 %v1262, 96
        %v1269 = vpop.permute.xlu0 %1268
        %vm1272 = vcmask 1048320
        %1273 = vst.msk [vmem:[#allocation2] sm:$0xff] %vm1272, %v1267
        %1274 = vst.msk [vmem:[#allocation2 + $0x8] sm:$0xff] %vm1272, %v1269
        %v1275 = vld [vmem:[#allocation2] sm:$0xff]
        %v1276 = vld [vmem:[#allocation2 + $0x8] sm:$0xff]
        %v1277 = vpack.c.bf16 %v1276, %v1275
        %v1278 = vld [vmem:[#allocation13] sm:$0xf]
        %v1279 = vld [vmem:[#allocation13 + $0x4] sm:$0xf]
        %v1280 = vld [vmem:[#allocation13 + $0x8] sm:$0xf]
        %v1281 = vld [vmem:[#allocation13 + $0xc] sm:$0xf]
        %v1282 = vld [vmem:[#allocation13 + $0x10] sm:$0xf]
        %v1283 = vld [vmem:[#allocation13 + $0x14] sm:$0xf]
        %v1284 = vld [vmem:[#allocation13 + $0x18] sm:$0xf]
        %v1285 = vld [vmem:[#allocation13 + $0x1c] sm:$0xf]
        %v1286 = vld [vmem:[#allocation13 + $0x20] sm:$0xf]
        %v1287 = vld [vmem:[#allocation13 + $0x24] sm:$0xf]
        %v1288 = vld [vmem:[#allocation13 + $0x28] sm:$0xf]
        %v1289 = vld [vmem:[#allocation13 + $0x2c] sm:$0xf]
        %v1290 = vld [vmem:[#allocation13 + $0x30] sm:$0xf]
        %v1291 = vld [vmem:[#allocation13 + $0x34] sm:$0xf]
        %v1292 = vld [vmem:[#allocation13 + $0x38] sm:$0xf]
        %v1293 = vld [vmem:[#allocation13 + $0x3c] sm:$0xf]
        %v1294 = vld [vmem:[%s10] sm:$0x1]
        %v1296 = vperm.slane %v1294, 0
        %v1314 = vunpack.c.l.b16 %v1278
        %v1315 = vunpack.c.l.b16 %v1279
        %v1316 = vunpack.c.l.b16 %v1280
        %v1317 = vunpack.c.l.b16 %v1281
        %v1318 = vunpack.c.l.b16 %v1282
        %v1319 = vunpack.c.l.b16 %v1283
        %v1320 = vunpack.c.l.b16 %v1284
        %v1321 = vunpack.c.l.b16 %v1285
        %v1322 = vunpack.c.l.b16 %v1286
        %v1323 = vunpack.c.l.b16 %v1287
        %v1324 = vunpack.c.l.b16 %v1288
        %v1325 = vunpack.c.l.b16 %v1289
        %v1326 = vunpack.c.l.b16 %v1290
        %v1327 = vunpack.c.l.b16 %v1291
        %v1328 = vunpack.c.l.b16 %v1292
        %v1329 = vunpack.c.l.b16 %v1293
        %v1330 = vpack.c.b16 %v1315, %v1314
        %v1331 = vpack.c.b16 %v1317, %v1316
        %v1332 = vpack.c.b16 %v1319, %v1318
        %v1333 = vpack.c.b16 %v1321, %v1320
        %v1334 = vpack.c.b16 %v1323, %v1322
        %v1335 = vpack.c.b16 %v1325, %v1324
        %v1336 = vpack.c.b16 %v1327, %v1326
        %v1337 = vpack.c.b16 %v1329, %v1328
        %1346 = vmatpush.bf16.msra.mxu0 %v1337
        %1347 = vmatpush.bf16.msra.mxu0 %v1336
        %1348 = vmatpush.bf16.msra.mxu0 %v1335
        %1349 = vmatpush.bf16.msra.mxu0 %v1334
        %1350 = vmatpush.bf16.msra.mxu0 %v1333
        %1351 = vmatpush.bf16.msra.mxu0 %v1332
        %1352 = vmatpush.bf16.msra.mxu0 %v1331
        %1353 = vmatpush.bf16.msra.mxu0 %v1330
        %1354 = vmatmul.bf16.gmra.mxu0 %v1277
        %v1355 = vpop.f32.mrf.mxu0
        %v1356 = vadd.f32 %v1296, %v1355
        %v1357 = vpop.f32.mrf.mxu0
        %v1358 = vadd.f32 %v1296, %v1357
        %1359 = vdwg.mxu0
        %v1360 = vld [vmem:[%s15] sm:$0x1]
        %v1361 = vld [vmem:[%s16] sm:$0x1]
        %1362 = vadd.xlane.f32.xlu0 %v1356
        %v1363 = vpop.xlane.xlu0 %1362
        %1364 = vadd.xlane.f32.xlu0 %v1358
        %v1365 = vpop.xlane.xlu0 %1364
        %v1366 = vrcp.pop 128.0
        %v1367 = vmul.f32 128.0, %v1366
        %v1368 = vsub.f32 1.0, %v1367
        %v1369 = vmul.f32 %v1366, %v1368
        %v1370 = vadd.f32 %v1366, %v1369
        %vm1371 = vweird.f32 %v1366
        %v1372 = vsel %vm1371, %v1366, %v1370
        %v1373 = vmul.f32 %v1363, %v1372
        %v1374 = vmul.f32 %v1365, %v1372
        %v1375 = vsub.f32 %v1356, %v1373
        %v1376 = vsub.f32 %v1358, %v1374
        %v1377 = vmul.f32 %v1375, %v1375
        %v1378 = vmul.f32 %v1376, %v1376
        %1379 = vadd.xlane.f32.xlu0 %v1377
        %v1380 = vpop.xlane.xlu0 %1379
        %1381 = vadd.xlane.f32.xlu0 %v1378
        %v1382 = vpop.xlane.xlu0 %1381
        %v1383 = vmul.f32 %v1380, 0.007874016
        %v1384 = vmul.f32 %v1382, 0.007874016
        %v1385 = vrsqrt.pop %v1383
        %v1386 = vmul.f32 %v1385, %v1383
        %v1387 = vmul.f32 %v1386, %v1385
        %v1388 = vmul.f32 0.5, %v1387
        %v1389 = vsub.f32 1.5, %v1388
        %v1390 = vmul.f32 %v1385, %v1389
        %v1391 = vmul.f32 %v1383, %v1390
        %vm1392 = vcmp.eq.f32.partialorder %v1383, inf
        %v1393 = vsel %vm1392, %v1383, %v1391
        %vm1394 = vcmp.eq.f32.partialorder %v1383, 0.0
        %v1395 = vand.u32 %v1383, 2147483648
        %v1396 = vsel %vm1394, %v1395, %v1393
        %v1397 = vrsqrt.pop %v1384
        %v1398 = vmul.f32 %v1397, %v1384
        %v1399 = vmul.f32 %v1398, %v1397
        %v1400 = vmul.f32 0.5, %v1399
        %v1401 = vsub.f32 1.5, %v1400
        %v1402 = vmul.f32 %v1397, %v1401
        %v1403 = vmul.f32 %v1384, %v1402
        %vm1404 = vcmp.eq.f32.partialorder %v1384, inf
        %v1405 = vsel %vm1404, %v1384, %v1403
        %vm1406 = vcmp.eq.f32.partialorder %v1384, 0.0
        %v1407 = vand.u32 %v1384, 2147483648
        %v1408 = vsel %vm1406, %v1407, %v1405
        %v1409 = vadd.f32 %v1396, 1e-06
        %v1410 = vadd.f32 %v1408, 1e-06
        %v1411 = vrcp.pop %v1409
        %v1412 = vrcp.pop %v1410
        %v1414 = vperm.slane %v1360, 0
        %v1416 = vmul.f32 %v1414, %v1375
        %v1417 = vmul.f32 %v1414, %v1376
        %v1418 = vmul.f32 %v1416, %v1411
        %v1419 = vmul.f32 %v1417, %v1412
        %v1421 = vperm.slane %v1361, 0
        %v1423 = vadd.f32 %v1418, %v1421
        %v1424 = vadd.f32 %v1419, %v1421
        %v1425 = vpack.c.bf16 %v1424, %v1423
        %v1426 = vld [vmem:[#allocation15] sm:$0xff]
        %v1427 = vld [vmem:[#allocation15 + $0x8] sm:$0xff]
        %v1428 = vld [vmem:[#allocation15 + $0x10] sm:$0xff]
        %v1429 = vld [vmem:[#allocation15 + $0x18] sm:$0xff]
        %v1430 = vld [vmem:[#allocation15 + $0x20] sm:$0xff]
        %v1431 = vld [vmem:[#allocation15 + $0x28] sm:$0xff]
        %v1432 = vld [vmem:[#allocation15 + $0x30] sm:$0xff]
        %v1433 = vld [vmem:[#allocation15 + $0x38] sm:$0xff]
        %v1434 = vld [vmem:[#allocation15 + $0x40] sm:$0xff]
        %v1435 = vld [vmem:[#allocation15 + $0x48] sm:$0xff]
        %v1436 = vld [vmem:[#allocation15 + $0x50] sm:$0xff]
        %v1437 = vld [vmem:[#allocation15 + $0x58] sm:$0xff]
        %v1438 = vld [vmem:[#allocation15 + $0x60] sm:$0xff]
        %v1439 = vld [vmem:[#allocation15 + $0x68] sm:$0xff]
        %v1440 = vld [vmem:[#allocation15 + $0x70] sm:$0xff]
        %v1441 = vld [vmem:[#allocation15 + $0x78] sm:$0xff]
        %v1442 = vld [vmem:[%s12] sm:$0x3]
        %v1444 = vperm.slane %v1442, 0
        %v1445 = vperm.slane %v1442, 1
        %v1464 = vunpack.c.l.b16 %v1426
        %v1465 = vunpack.c.h.b16 %v1426
        %v1466 = vunpack.c.l.b16 %v1427
        %v1467 = vunpack.c.h.b16 %v1427
        %v1468 = vunpack.c.l.b16 %v1428
        %v1469 = vunpack.c.h.b16 %v1428
        %v1470 = vunpack.c.l.b16 %v1429
        %v1471 = vunpack.c.h.b16 %v1429
        %v1472 = vunpack.c.l.b16 %v1430
        %v1473 = vunpack.c.h.b16 %v1430
        %v1474 = vunpack.c.l.b16 %v1431
        %v1475 = vunpack.c.h.b16 %v1431
        %v1476 = vunpack.c.l.b16 %v1432
        %v1477 = vunpack.c.h.b16 %v1432
        %v1478 = vunpack.c.l.b16 %v1433
        %v1479 = vunpack.c.h.b16 %v1433
        %v1480 = vunpack.c.l.b16 %v1434
        %v1481 = vunpack.c.h.b16 %v1434
        %v1482 = vunpack.c.l.b16 %v1435
        %v1483 = vunpack.c.h.b16 %v1435
        %v1484 = vunpack.c.l.b16 %v1436
        %v1485 = vunpack.c.h.b16 %v1436
        %v1486 = vunpack.c.l.b16 %v1437
        %v1487 = vunpack.c.h.b16 %v1437
        %v1488 = vunpack.c.l.b16 %v1438
        %v1489 = vunpack.c.h.b16 %v1438
        %v1490 = vunpack.c.l.b16 %v1439
        %v1491 = vunpack.c.h.b16 %v1439
        %v1492 = vunpack.c.l.b16 %v1440
        %v1493 = vunpack.c.h.b16 %v1440
        %v1494 = vunpack.c.l.b16 %v1441
        %v1495 = vunpack.c.h.b16 %v1441
        %v1496 = vpack.c.b16 %v1466, %v1464
        %v1497 = vpack.c.b16 %v1467, %v1465
        %v1498 = vpack.c.b16 %v1470, %v1468
        %v1499 = vpack.c.b16 %v1471, %v1469
        %v1500 = vpack.c.b16 %v1474, %v1472
        %v1501 = vpack.c.b16 %v1475, %v1473
        %v1502 = vpack.c.b16 %v1478, %v1476
        %v1503 = vpack.c.b16 %v1479, %v1477
        %v1504 = vpack.c.b16 %v1482, %v1480
        %v1505 = vpack.c.b16 %v1483, %v1481
        %v1506 = vpack.c.b16 %v1486, %v1484
        %v1507 = vpack.c.b16 %v1487, %v1485
        %v1508 = vpack.c.b16 %v1490, %v1488
        %v1509 = vpack.c.b16 %v1491, %v1489
        %v1510 = vpack.c.b16 %v1494, %v1492
        %v1511 = vpack.c.b16 %v1495, %v1493
        %1528 = vmatpush.bf16.msra.mxu0 %v1510
        %1529 = vmatpush.bf16.msra.mxu0 %v1508
        %1530 = vmatpush.bf16.msra.mxu0 %v1506
        %1531 = vmatpush.bf16.msra.mxu0 %v1504
        %1532 = vmatpush.bf16.msra.mxu0 %v1502
        %1533 = vmatpush.bf16.msra.mxu0 %v1500
        %1534 = vmatpush.bf16.msra.mxu0 %v1498
        %1535 = vmatpush.bf16.msra.mxu0 %v1496
        %1536 = vmatmul.bf16.gmra.mxu0 %v1425
        %v1537 = vpop.f32.mrf.mxu0
        %v1538 = vadd.f32 %v1444, %v1537
        %v1539 = vpop.f32.mrf.mxu0
        %v1540 = vadd.f32 %v1444, %v1539
        %1541 = vdwg.mxu0
        %1542 = vmatpush.bf16.msra.mxu0 %v1511
        %1543 = vmatpush.bf16.msra.mxu0 %v1509
        %1544 = vmatpush.bf16.msra.mxu0 %v1507
        %1545 = vmatpush.bf16.msra.mxu0 %v1505
        %1546 = vmatpush.bf16.msra.mxu0 %v1503
        %1547 = vmatpush.bf16.msra.mxu0 %v1501
        %1548 = vmatpush.bf16.msra.mxu0 %v1499
        %1549 = vmatpush.bf16.msra.mxu0 %v1497
        %1550 = vmatmul.bf16.gmra.mxu0 %v1425
        %v1551 = vpop.f32.mrf.mxu0
        %v1552 = vadd.f32 %v1445, %v1551
        %v1553 = vpop.f32.mrf.mxu0
        %v1554 = vadd.f32 %v1445, %v1553
        %1555 = vdwg.mxu0
        %v1556 = vmax.f32 %v1538, 0.0
        %v1557 = vmax.f32 %v1552, 0.0
        %v1558 = vmax.f32 %v1540, 0.0
        %v1559 = vmax.f32 %v1554, 0.0
        %v1560 = vpack.c.bf16 %v1558, %v1556
        %v1561 = vpack.c.bf16 %v1559, %v1557
        %v1562 = vld [vmem:[#allocation16] sm:$0xf]
        %v1563 = vld [vmem:[#allocation16 + $0x4] sm:$0xf]
        %v1564 = vld [vmem:[#allocation16 + $0x8] sm:$0xf]
        %v1565 = vld [vmem:[#allocation16 + $0xc] sm:$0xf]
        %v1566 = vld [vmem:[#allocation16 + $0x10] sm:$0xf]
        %v1567 = vld [vmem:[#allocation16 + $0x14] sm:$0xf]
        %v1568 = vld [vmem:[#allocation16 + $0x18] sm:$0xf]
        %v1569 = vld [vmem:[#allocation16 + $0x1c] sm:$0xf]
        %v1570 = vld [vmem:[#allocation16 + $0x20] sm:$0xf]
        %v1571 = vld [vmem:[#allocation16 + $0x24] sm:$0xf]
        %v1572 = vld [vmem:[#allocation16 + $0x28] sm:$0xf]
        %v1573 = vld [vmem:[#allocation16 + $0x2c] sm:$0xf]
        %v1574 = vld [vmem:[#allocation16 + $0x30] sm:$0xf]
        %v1575 = vld [vmem:[#allocation16 + $0x34] sm:$0xf]
        %v1576 = vld [vmem:[#allocation16 + $0x38] sm:$0xf]
        %v1577 = vld [vmem:[#allocation16 + $0x3c] sm:$0xf]
        %v1578 = vld [vmem:[#allocation16 + $0x40] sm:$0xf]
        %v1579 = vld [vmem:[#allocation16 + $0x44] sm:$0xf]
        %v1580 = vld [vmem:[#allocation16 + $0x48] sm:$0xf]
        %v1581 = vld [vmem:[#allocation16 + $0x4c] sm:$0xf]
        %v1582 = vld [vmem:[#allocation16 + $0x50] sm:$0xf]
        %v1583 = vld [vmem:[#allocation16 + $0x54] sm:$0xf]
        %v1584 = vld [vmem:[#allocation16 + $0x58] sm:$0xf]
        %v1585 = vld [vmem:[#allocation16 + $0x5c] sm:$0xf]
        %v1586 = vld [vmem:[#allocation16 + $0x60] sm:$0xf]
        %v1587 = vld [vmem:[#allocation16 + $0x64] sm:$0xf]
        %v1588 = vld [vmem:[#allocation16 + $0x68] sm:$0xf]
        %v1589 = vld [vmem:[#allocation16 + $0x6c] sm:$0xf]
        %v1590 = vld [vmem:[#allocation16 + $0x70] sm:$0xf]
        %v1591 = vld [vmem:[#allocation16 + $0x74] sm:$0xf]
        %v1592 = vld [vmem:[#allocation16 + $0x78] sm:$0xf]
        %v1593 = vld [vmem:[#allocation16 + $0x7c] sm:$0xf]
        %v1594 = vld [vmem:[%s14] sm:$0x1]
        %v1596 = vperm.slane %v1594, 0
        %v1630 = vunpack.c.l.b16 %v1562
        %v1631 = vunpack.c.l.b16 %v1563
        %v1632 = vunpack.c.l.b16 %v1564
        %v1633 = vunpack.c.l.b16 %v1565
        %v1634 = vunpack.c.l.b16 %v1566
        %v1635 = vunpack.c.l.b16 %v1567
        %v1636 = vunpack.c.l.b16 %v1568
        %v1637 = vunpack.c.l.b16 %v1569
        %v1638 = vunpack.c.l.b16 %v1570
        %v1639 = vunpack.c.l.b16 %v1571
        %v1640 = vunpack.c.l.b16 %v1572
        %v1641 = vunpack.c.l.b16 %v1573
        %v1642 = vunpack.c.l.b16 %v1574
        %v1643 = vunpack.c.l.b16 %v1575
        %v1644 = vunpack.c.l.b16 %v1576
        %v1645 = vunpack.c.l.b16 %v1577
        %v1646 = vunpack.c.l.b16 %v1578
        %v1647 = vunpack.c.l.b16 %v1579
        %v1648 = vunpack.c.l.b16 %v1580
        %v1649 = vunpack.c.l.b16 %v1581
        %v1650 = vunpack.c.l.b16 %v1582
        %v1651 = vunpack.c.l.b16 %v1583
        %v1652 = vunpack.c.l.b16 %v1584
        %v1653 = vunpack.c.l.b16 %v1585
        %v1654 = vunpack.c.l.b16 %v1586
        %v1655 = vunpack.c.l.b16 %v1587
        %v1656 = vunpack.c.l.b16 %v1588
        %v1657 = vunpack.c.l.b16 %v1589
        %v1658 = vunpack.c.l.b16 %v1590
        %v1659 = vunpack.c.l.b16 %v1591
        %v1660 = vunpack.c.l.b16 %v1592
        %v1661 = vunpack.c.l.b16 %v1593
        %v1662 = vpack.c.b16 %v1631, %v1630
        %v1663 = vpack.c.b16 %v1633, %v1632
        %v1664 = vpack.c.b16 %v1635, %v1634
        %v1665 = vpack.c.b16 %v1637, %v1636
        %v1666 = vpack.c.b16 %v1639, %v1638
        %v1667 = vpack.c.b16 %v1641, %v1640
        %v1668 = vpack.c.b16 %v1643, %v1642
        %v1669 = vpack.c.b16 %v1645, %v1644
        %v1670 = vpack.c.b16 %v1647, %v1646
        %v1671 = vpack.c.b16 %v1649, %v1648
        %v1672 = vpack.c.b16 %v1651, %v1650
        %v1673 = vpack.c.b16 %v1653, %v1652
        %v1674 = vpack.c.b16 %v1655, %v1654
        %v1675 = vpack.c.b16 %v1657, %v1656
        %v1676 = vpack.c.b16 %v1659, %v1658
        %v1677 = vpack.c.b16 %v1661, %v1660
        %1694 = vmatpush.bf16.msra.mxu0 %v1669
        %1695 = vmatpush.bf16.msra.mxu0 %v1668
        %1696 = vmatpush.bf16.msra.mxu0 %v1667
        %1697 = vmatpush.bf16.msra.mxu0 %v1666
        %1698 = vmatpush.bf16.msra.mxu0 %v1665
        %1699 = vmatpush.bf16.msra.mxu0 %v1664
        %1700 = vmatpush.bf16.msra.mxu0 %v1663
        %1701 = vmatpush.bf16.msra.mxu0 %v1662
        %1702 = vmatmul.bf16.gmra.mxu0 %v1560
        %v1703 = vpop.f32.mrf.mxu0
        %v1704 = vadd.f32 %v1596, %v1703
        %v1705 = vpop.f32.mrf.mxu0
        %v1706 = vadd.f32 %v1596, %v1705
        %1707 = vdwg.mxu0
        %1708 = vmatpush.bf16.msra.mxu0 %v1677
        %1709 = vmatpush.bf16.msra.mxu0 %v1676
        %1710 = vmatpush.bf16.msra.mxu0 %v1675
        %1711 = vmatpush.bf16.msra.mxu0 %v1674
        %1712 = vmatpush.bf16.msra.mxu0 %v1673
        %1713 = vmatpush.bf16.msra.mxu0 %v1672
        %1714 = vmatpush.bf16.msra.mxu0 %v1671
        %1715 = vmatpush.bf16.msra.mxu0 %v1670
        %1716 = vmatmul.bf16.gmra.mxu0 %v1561
        %v1717 = vpop.f32.mrf.mxu0
        %v1718 = vadd.f32 %v1704, %v1717
        %v1719 = vpop.f32.mrf.mxu0
        %v1720 = vadd.f32 %v1706, %v1719
        %1721 = vdwg.mxu0
        %v1722 = vadd.f32 %v1423, %v1718
        %v1723 = vadd.f32 %v1424, %v1720
        %v1724 = vld [vmem:[%s17] sm:$0x1]
        %v1725 = vld [vmem:[%s18] sm:$0x1]
        %1726 = vadd.xlane.f32.xlu0 %v1722
        %v1727 = vpop.xlane.xlu0 %1726
        %1728 = vadd.xlane.f32.xlu0 %v1723
        %v1729 = vpop.xlane.xlu0 %1728
        %v1730 = vmul.f32 %v1727, %v1372
        %v1731 = vmul.f32 %v1729, %v1372
        %v1732 = vsub.f32 %v1722, %v1730
        %v1733 = vsub.f32 %v1723, %v1731
        %v1734 = vmul.f32 %v1732, %v1732
        %v1735 = vmul.f32 %v1733, %v1733
        %1736 = vadd.xlane.f32.xlu0 %v1734
        %v1737 = vpop.xlane.xlu0 %1736
        %1738 = vadd.xlane.f32.xlu0 %v1735
        %v1739 = vpop.xlane.xlu0 %1738
        %v1740 = vmul.f32 %v1737, 0.007874016
        %v1741 = vmul.f32 %v1739, 0.007874016
        %v1742 = vrsqrt.pop %v1740
        %v1743 = vmul.f32 %v1742, %v1740
        %v1744 = vmul.f32 %v1743, %v1742
        %v1745 = vmul.f32 0.5, %v1744
        %v1746 = vsub.f32 1.5, %v1745
        %v1747 = vmul.f32 %v1742, %v1746
        %v1748 = vmul.f32 %v1740, %v1747
        %vm1749 = vcmp.eq.f32.partialorder %v1740, inf
        %v1750 = vsel %vm1749, %v1740, %v1748
        %vm1751 = vcmp.eq.f32.partialorder %v1740, 0.0
        %v1752 = vand.u32 %v1740, 2147483648
        %v1753 = vsel %vm1751, %v1752, %v1750
        %v1754 = vrsqrt.pop %v1741
        %v1755 = vmul.f32 %v1754, %v1741
        %v1756 = vmul.f32 %v1755, %v1754
        %v1757 = vmul.f32 0.5, %v1756
        %v1758 = vsub.f32 1.5, %v1757
        %v1759 = vmul.f32 %v1754, %v1758
        %v1760 = vmul.f32 %v1741, %v1759
        %vm1761 = vcmp.eq.f32.partialorder %v1741, inf
        %v1762 = vsel %vm1761, %v1741, %v1760
        %vm1763 = vcmp.eq.f32.partialorder %v1741, 0.0
        %v1764 = vand.u32 %v1741, 2147483648
        %v1765 = vsel %vm1763, %v1764, %v1762
        %v1766 = vadd.f32 %v1753, 1e-06
        %v1767 = vadd.f32 %v1765, 1e-06
        %v1768 = vrcp.pop %v1766
        %v1769 = vrcp.pop %v1767
        %v1771 = vperm.slane %v1724, 0
        %v1773 = vmul.f32 %v1771, %v1732
        %v1774 = vmul.f32 %v1771, %v1733
        %v1775 = vmul.f32 %v1773, %v1768
        %v1776 = vmul.f32 %v1774, %v1769
        %v1778 = vperm.slane %v1725, 0
        %v1780 = vadd.f32 %v1775, %v1778
        %v1781 = vadd.f32 %v1776, %v1778
        %1782 = vst [vmem:[%s770] sm:$0xff] %v1780
        %1783 = vst [vmem:[%s770 + $0x8] sm:$0xff] %v1781
        %s1784 = sand.u32 %s457, 1
        %s1785 = scalar_lea.sflag [#allocation5], %s1784
        %s1786 = sand.u32 %s457, 1
        %s1787 = smul.addr %s1786, 16
        %s1788 = scalar_lea.vmem [#allocation18], %s1787
        // Predicated region
        $region133: #{tpu_custom_call.1} parent=95 // pred_check
          %p1789 = pneg %p467
        $region134: #{tpu_custom_call.1} parent=95 // pred_check_branch
          %1791 = sbr.rel (%p1789) target = $region136
        $region135: #{tpu_custom_call.1} parent=95 // pred_region
          %1793 = vsyncadd %s1785, 0
          %s1794 = smul.addr %s40, 2
          %s1795 = smul.addr %s1794, 8
          %s1796 = scalar_lea.hbm %s19, %s1795
          %s1797 = sshll.u32 %s1788, 4
          %s1798 = int_to_ptr.vmem [resolvable:$true] %s1797
          %s1799 = sshll.u32 %s1796, 4
          %s1800 = int_to_ptr.hbm [resolvable:$true] %s1799
          %1805 = dma.vmem_to_hbm [thread:$0]  %s1798, 256, %s1800, %s1785, 128, 128, 8
        $region136: #{tpu_custom_call.1} parent=95 // pred_fallthru
          _
      $region96: #{tpu_custom_call.1} parent=5 // pred_fallthru
        _
      %p1806 = scmp.le.s32.totalorder 2, %s35
      // Predicated region
      $region137: #{tpu_custom_call.1} parent=5 // pred_check
        %p1807 = pneg %p1806
      $region138: #{tpu_custom_call.1} parent=5 // pred_check_branch
        %1809 = sbr.rel (%p1807) target = $region140
      $region139: #{tpu_custom_call.1} parent=5 // pred_region
        %s1810 = ssub.s32 %s35, 2
        // Predicated region
        $region141: #{tpu_custom_call.1} parent=139 // pred_check
          %p1811 = pneg %p473
        $region142: #{tpu_custom_call.1} parent=139 // pred_check_branch
          %1813 = sbr.rel (%p1811) target = $region144
        $region143: #{tpu_custom_call.1} parent=139 // pred_region
          %s1814 = sand.u32 %s458, 1
          %s1815 = scalar_lea.sflag [#allocation5], %s1814
          %s1816 = sand.u32 %s458, 1
          %s1817 = smul.addr %s1816, 16
          %s1818 = scalar_lea.vmem [#allocation18], %s1817
          %1820 = dma.done %s1815, 256
        $region144: #{tpu_custom_call.1} parent=139 // pred_fallthru
          _
      $region140: #{tpu_custom_call.1} parent=5 // pred_fallthru
        _
    $region6: #{tpu_custom_call.1} parent=1 // loop_footer
      %s39 = sadd.s32 1, %s35
    $region7: #{tpu_custom_call.1} parent=1 // loop_footer_branch
      %34 = sbr.rel target = $region3
    $region8: #{tpu_custom_call.1} parent=1 // loop_exit
      _
    %1821 = vsyncpa [#allocation4], 1
    %s1822 = scalar_lea.sflag [#allocation4], 1
    %1823 = vsyncpa %s1822, 1
    %1824 = vsyncpa [#allocation7], 1
    %1825 = vsyncpa [#allocation11], 1
    %1826 = vsyncpa [#allocation14], 1
    %1827 = vsyncpa [#allocation17], 1
    %1828 = vsyncpa [#allocation5], 1
    %s1829 = scalar_lea.sflag [#allocation5], 1
    %1830 = vsyncpa %s1829, 1

</llo_original>
